<compile_context>
chip_gen: v6e
topology: v6e:2x2x1
jax: 0.10.0
libtpu: 0.0.40
codegen_flags: <defaults>
</compile_context>

<pallas_src>
import jax
import jax.numpy as jnp
import numpy as np
from jax.experimental import pallas as pl
from jax.experimental.pallas import tpu as pltpu

# ---- static problem sizes (consistent with Oracle(input_size=32)) ----
D_IN = 32
D1, D2, D3, D4, D5, D_OUT = 64, 128, 512, 128, 64, 1
LANE = 128
TB = 8  # batch rows per grid step

# Row offsets of each pre-transposed / lane-padded weight inside the packed slab.
R_W1, R_W2, R_W3, R_W4, R_W5, R_END = 0, 32, 160, 672, 1184, 1312
# Rows of the aux slab (biases + fc6 weight row), all f32, lane width 128.
A_B1, A_B2, A_B3, A_B4, A_B5, A_W6, A_B6 = 0, 1, 2, 6, 7, 8, 9
AUX_ROWS = 16


def oracle_kernel(x_ref, w_ref, aux_ref, out_ref):
    f32, bf16 = jnp.float32, jnp.bfloat16
    x = x_ref[...].astype(bf16)                                        # (TB, 32)

    # fc1: (TB,32)@(32,128p)  -- cols >=64 of W1p are zero, so the tail stays 0.
    h = jnp.dot(x, w_ref[R_W1:R_W2, :], preferred_element_type=f32)
    h = jnp.maximum(h + aux_ref[A_B1:A_B1 + 1, :], 0.0).astype(bf16)

    # fc2: (TB,128)@(128,128) -- rows >=64 of W2p are zero.
    h = jnp.dot(h, w_ref[R_W2:R_W3, :], preferred_element_type=f32)
    h = jnp.maximum(h + aux_ref[A_B2:A_B2 + 1, :], 0.0).astype(bf16)

    # fc3 (128->512) + ReLU + fc4 (512->128), chunked over the 512 dim so no
    # 512-lane intermediate is materialized; accumulate fc4 partials in f32.
    acc = jnp.zeros((TB, LANE), dtype=f32)
    for c in range(4):
        w3c = w_ref[R_W3 + LANE * c: R_W3 + LANE * (c + 1), :]
        h3c = jnp.dot(h, w3c, preferred_element_type=f32)
        h3c = jnp.maximum(h3c + aux_ref[A_B3 + c:A_B3 + c + 1, :], 0.0).astype(bf16)
        w4c = w_ref[R_W4 + LANE * c: R_W4 + LANE * (c + 1), :]
        acc = acc + jnp.dot(h3c, w4c, preferred_element_type=f32)
    h = jnp.maximum(acc + aux_ref[A_B4:A_B4 + 1, :], 0.0).astype(bf16)

    # fc5: (TB,128)@(128,128p) -- cols >=64 of W5p zero; keep f32 for fc6.
    h = jnp.dot(h, w_ref[R_W5:R_END, :], preferred_element_type=f32)
    h = jnp.maximum(h + aux_ref[A_B5:A_B5 + 1, :], 0.0)                # (TB,128) f32

    # fc6 (64->1) + sigmoid: N=1, so VPU broadcast-multiply + XLU lane reduce
    # instead of firing the MXU for a 1-column matmul.
    logit = jnp.sum(h * aux_ref[A_W6:A_W6 + 1, :], axis=-1, keepdims=True)
    logit = logit + aux_ref[A_B6:A_B6 + 1, 0:1]
    out_ref[...] = jax.nn.sigmoid(logit)


def pack_oracle_params(w1, b1, w2, b2, w3, b3, w4, b4, w5, b5, w6, b6):
    """PyTorch layouts: wN = (out, in), bN = (out,).  Call ONCE at load time."""
    def padc(a):                      # pad lanes (last dim) to LANE with zeros
        return jnp.pad(a, ((0, 0), (0, LANE - a.shape[1])))

    def padr(a, n):                   # pad rows with zeros
        return jnp.pad(a, ((0, n - a.shape[0]), (0, 0)))

    w3t = w3.T                                                        # (128, 512)
    w3_chunks = jnp.concatenate(
        [w3t[:, LANE * c:LANE * (c + 1)] for c in range(4)], axis=0)  # (512, 128)

    w_slab = jnp.concatenate([
        padc(w1.T),                   # rows   0:32    (32,128)
        padr(w2.T, LANE),             # rows  32:160   (128,128)
        w3_chunks,                    # rows 160:672   (512,128)
        w4.T,                         # rows 672:1184  (512,128)
        padc(w5.T),                   # rows 1184:1312 (128,128)
    ], axis=0).astype(jnp.bfloat16)

    def row(v):
        return jnp.pad(v, (0, LANE - v.shape[0]))[None, :]

    aux = jnp.concatenate([
        row(b1), row(b2),             # rows 0,1
        b3.reshape(4, LANE),          # rows 2..5
        row(b4), row(b5),             # rows 6,7
        row(w6.reshape(-1)),          # row 8: fc6 weight as a lane row
        row(b6),                      # row 9: fc6 bias in lane 0
        jnp.zeros((AUX_ROWS - 10, LANE), jnp.float32),
    ], axis=0).astype(jnp.float32)
    return w_slab, aux


def oracle_forward(x, w_slab, aux):
    b = x.shape[0]
    assert b % TB == 0, "batch must be a multiple of the batch tile"
    flops = 2 * b * (D_IN * D1 + D1 * D2 + D2 * D3 + D3 * D4 + D4 * D5 + D5 * D_OUT)
    bytes_accessed = int(w_slab.size) * 2 + int(aux.size) * 4 + int(x.size) * 4 + b * D_OUT * 4
    return pl.pallas_call(
        oracle_kernel,
        out_shape=jax.ShapeDtypeStruct((b, D_OUT), jnp.float32),
        grid=(b // TB,),
        in_specs=[
            pl.BlockSpec((TB, D_IN), lambda i: (i, 0)),        # x: tiled + pipelined
            pl.BlockSpec((R_END, LANE), lambda i: (0, 0)),     # weights: fetched once, VMEM-resident
            pl.BlockSpec((AUX_ROWS, LANE), lambda i: (0, 0)),  # biases + fc6 row: fetched once
        ],
        out_specs=pl.BlockSpec((TB, D_OUT), lambda i: (i, 0)),
        compiler_params=pltpu.CompilerParams(dimension_semantics=("arbitrary",)),
        cost_estimate=pl.CostEstimate(flops=int(flops), transcendentals=int(b),
                                      bytes_accessed=int(bytes_accessed)),
    )(x, w_slab, aux)


if __name__ == "__main__":
    B = 16
    key = jax.random.PRNGKey(0)
    ks = jax.random.split(key, 13)

    def uni(k, shape, fan_in):
        bound = 1.0 / np.sqrt(fan_in)
        return jax.random.uniform(k, shape, jnp.float32, -bound, bound)

    # Deterministic params in PyTorch layouts: Linear.weight = (out, in).
    w1 = uni(ks[0], (D1, D_IN), D_IN);  b1 = uni(ks[1], (D1,), D_IN)
    w2 = uni(ks[2], (D2, D1), D1);      b2 = uni(ks[3], (D2,), D1)
    w3 = uni(ks[4], (D3, D2), D2);      b3 = uni(ks[5], (D3,), D2)
    w4 = uni(ks[6], (D4, D3), D3);      b4 = uni(ks[7], (D4,), D3)
    w5 = uni(ks[8], (D5, D4), D4);      b5 = uni(ks[9], (D5,), D4)
    w6 = uni(ks[10], (D_OUT, D5), D5);  b6 = uni(ks[11], (D_OUT,), D5)
    x = jax.random.normal(ks[12], (B, D_IN), jnp.float32)

    # Pack once at load time (never inside the per-call hot path).
    w_slab, aux = pack_oracle_params(w1, b1, w2, b2, w3, b3, w4, b4, w5, b5, w6, b6)

    out = jax.block_until_ready(oracle_forward(x, w_slab, aux))

    # Reference 1: mimics the kernel's numerics (bf16 weights/activations,
    # f32 accumulation, f32 fc6) — tight check.
    def mimic(x):
        bf = jnp.bfloat16
        h = x.astype(bf)
        for (w, b) in ((w1, b1), (w2, b2), (w3, b3), (w4, b4)):
            h = jnp.maximum(jnp.dot(h, w.T.astype(bf),
                                    preferred_element_type=jnp.float32) + b[None, :], 0.0)
            h = h.astype(bf)
        h = jnp.maximum(jnp.dot(h, w5.T.astype(bf),
                                preferred_element_type=jnp.float32) + b5[None, :], 0.0)
        return jax.nn.sigmoid(h @ w6.T + b6[None, :])

    # Reference 2: full-f32 PyTorch-equivalent forward — loose (bf16 drift) check.
    def ref_f32(x):
        h = x
        for (w, b) in ((w1, b1), (w2, b2), (w3, b3), (w4, b4), (w5, b5)):
            h = jax.nn.relu(h @ w.T + b[None, :])
        return jax.nn.sigmoid(h @ w6.T + b6[None, :])

    np.testing.assert_allclose(np.asarray(out), np.asarray(mimic(x)), rtol=2e-3, atol=2e-3)
    np.testing.assert_allclose(np.asarray(out), np.asarray(ref_f32(x)), rtol=5e-2, atol=5e-2)
    print("KERNEL_OK")
</pallas_src>

<mosaic_0001>
module attributes {stable_mosaic.version = 11 : i64} {
  func.func @oracle_kernel(%arg0: i32, %arg1: memref<8x32xf32, #tpu.memory_space<vmem>>, %arg2: memref<1312x128xbf16, #tpu.memory_space<vmem>>, %arg3: memref<16x128xf32, #tpu.memory_space<vmem>>, %arg4: memref<8x1xf32, #tpu.memory_space<vmem>>) attributes {dimension_semantics = [#tpu.dimension_semantics<arbitrary>], iteration_bounds = array<i64: 2>, scalar_prefetch = 0 : i64, scratch_operands = 0 : i64, tpu.core_type = #tpu.core_type<tc>, window_params = [{transform_indices = @transform_0, window_bounds = array<i64: 8, 32>}, {pipeline_mode = #tpu.pipeline_mode<synchronous>, transform_indices = @transform_1, window_bounds = array<i64: 1312, 128>}, {pipeline_mode = #tpu.pipeline_mode<synchronous>, transform_indices = @transform_2, window_bounds = array<i64: 16, 128>}, {transform_indices = @transform_3, window_bounds = array<i64: 8, 1>}]} {
    %c0 = arith.constant 0 : index
    %c0_0 = arith.constant 0 : index
    %0 = vector.load %arg1[%c0, %c0_0] : memref<8x32xf32, #tpu.memory_space<vmem>>, vector<8x32xf32>
    %1 = arith.truncf %0 : vector<8x32xf32> to vector<8x32xbf16>
    %c0_1 = arith.constant 0 : index
    %c0_2 = arith.constant 0 : index
    %2 = vector.load %arg2[%c0_1, %c0_2] : memref<1312x128xbf16, #tpu.memory_space<vmem>>, vector<32x128xbf16>
    %cst = arith.constant dense<0.000000e+00> : vector<8x128xf32>
    %3 = tpu.matmul %1, %2, %cst {dimension_numbers = #tpu.dot_dimension_numbers<[1], [0], [0], [1], [0, 0, 1, 1], [], []>} : vector<8x32xbf16>, vector<32x128xbf16>, vector<8x128xf32> -> vector<8x128xf32>
    %c0_3 = arith.constant 0 : index
    %c0_4 = arith.constant 0 : index
    %4 = vector.load %arg3[%c0_3, %c0_4] : memref<16x128xf32, #tpu.memory_space<vmem>>, vector<1x128xf32>
    %5 = vector.broadcast %4 : vector<1x128xf32> to vector<8x128xf32>
    %6 = arith.addf %3, %5 : vector<8x128xf32>
    %cst_5 = arith.constant 0.000000e+00 : f32
    %7 = vector.broadcast %cst_5 : f32 to vector<8x128xf32>
    %8 = arith.maximumf %6, %7 : vector<8x128xf32>
    %9 = arith.truncf %8 : vector<8x128xf32> to vector<8x128xbf16>
    %c32 = arith.constant 32 : index
    %c0_6 = arith.constant 0 : index
    %10 = vector.load %arg2[%c32, %c0_6] : memref<1312x128xbf16, #tpu.memory_space<vmem>>, vector<128x128xbf16>
    %cst_7 = arith.constant dense<0.000000e+00> : vector<8x128xf32>
    %11 = tpu.matmul %9, %10, %cst_7 {dimension_numbers = #tpu.dot_dimension_numbers<[1], [0], [0], [1], [0, 0, 1, 1], [], []>} : vector<8x128xbf16>, vector<128x128xbf16>, vector<8x128xf32> -> vector<8x128xf32>
    %c1 = arith.constant 1 : index
    %c0_8 = arith.constant 0 : index
    %12 = vector.load %arg3[%c1, %c0_8] : memref<16x128xf32, #tpu.memory_space<vmem>>, vector<1x128xf32>
    %13 = vector.broadcast %12 : vector<1x128xf32> to vector<8x128xf32>
    %14 = arith.addf %11, %13 : vector<8x128xf32>
    %cst_9 = arith.constant 0.000000e+00 : f32
    %15 = vector.broadcast %cst_9 : f32 to vector<8x128xf32>
    %16 = arith.maximumf %14, %15 : vector<8x128xf32>
    %17 = arith.truncf %16 : vector<8x128xf32> to vector<8x128xbf16>
    %cst_10 = arith.constant 0.000000e+00 : f32
    %18 = vector.broadcast %cst_10 : f32 to vector<8x128xf32>
    %c160 = arith.constant 160 : index
    %c0_11 = arith.constant 0 : index
    %19 = vector.load %arg2[%c160, %c0_11] : memref<1312x128xbf16, #tpu.memory_space<vmem>>, vector<128x128xbf16>
    %cst_12 = arith.constant dense<0.000000e+00> : vector<8x128xf32>
    %20 = tpu.matmul %17, %19, %cst_12 {dimension_numbers = #tpu.dot_dimension_numbers<[1], [0], [0], [1], [0, 0, 1, 1], [], []>} : vector<8x128xbf16>, vector<128x128xbf16>, vector<8x128xf32> -> vector<8x128xf32>
    %c2 = arith.constant 2 : index
    %c0_13 = arith.constant 0 : index
    %21 = vector.load %arg3[%c2, %c0_13] : memref<16x128xf32, #tpu.memory_space<vmem>>, vector<1x128xf32>
    %22 = vector.broadcast %21 : vector<1x128xf32> to vector<8x128xf32>
    %23 = arith.addf %20, %22 : vector<8x128xf32>
    %cst_14 = arith.constant 0.000000e+00 : f32
    %24 = vector.broadcast %cst_14 : f32 to vector<8x128xf32>
    %25 = arith.maximumf %23, %24 : vector<8x128xf32>
    %26 = arith.truncf %25 : vector<8x128xf32> to vector<8x128xbf16>
    %c672 = arith.constant 672 : index
    %c0_15 = arith.constant 0 : index
    %27 = vector.load %arg2[%c672, %c0_15] : memref<1312x128xbf16, #tpu.memory_space<vmem>>, vector<128x128xbf16>
    %cst_16 = arith.constant dense<0.000000e+00> : vector<8x128xf32>
    %28 = tpu.matmul %26, %27, %cst_16 {dimension_numbers = #tpu.dot_dimension_numbers<[1], [0], [0], [1], [0, 0, 1, 1], [], []>} : vector<8x128xbf16>, vector<128x128xbf16>, vector<8x128xf32> -> vector<8x128xf32>
    %29 = arith.addf %18, %28 : vector<8x128xf32>
    %c288 = arith.constant 288 : index
    %c0_17 = arith.constant 0 : index
    %30 = vector.load %arg2[%c288, %c0_17] : memref<1312x128xbf16, #tpu.memory_space<vmem>>, vector<128x128xbf16>
    %cst_18 = arith.constant dense<0.000000e+00> : vector<8x128xf32>
    %31 = tpu.matmul %17, %30, %cst_18 {dimension_numbers = #tpu.dot_dimension_numbers<[1], [0], [0], [1], [0, 0, 1, 1], [], []>} : vector<8x128xbf16>, vector<128x128xbf16>, vector<8x128xf32> -> vector<8x128xf32>
    %c3 = arith.constant 3 : index
    %c0_19 = arith.constant 0 : index
    %32 = vector.load %arg3[%c3, %c0_19] : memref<16x128xf32, #tpu.memory_space<vmem>>, vector<1x128xf32>
    %33 = vector.broadcast %32 : vector<1x128xf32> to vector<8x128xf32>
    %34 = arith.addf %31, %33 : vector<8x128xf32>
    %cst_20 = arith.constant 0.000000e+00 : f32
    %35 = vector.broadcast %cst_20 : f32 to vector<8x128xf32>
    %36 = arith.maximumf %34, %35 : vector<8x128xf32>
    %37 = arith.truncf %36 : vector<8x128xf32> to vector<8x128xbf16>
    %c800 = arith.constant 800 : index
    %c0_21 = arith.constant 0 : index
    %38 = vector.load %arg2[%c800, %c0_21] : memref<1312x128xbf16, #tpu.memory_space<vmem>>, vector<128x128xbf16>
    %cst_22 = arith.constant dense<0.000000e+00> : vector<8x128xf32>
    %39 = tpu.matmul %37, %38, %cst_22 {dimension_numbers = #tpu.dot_dimension_numbers<[1], [0], [0], [1], [0, 0, 1, 1], [], []>} : vector<8x128xbf16>, vector<128x128xbf16>, vector<8x128xf32> -> vector<8x128xf32>
    %40 = arith.addf %29, %39 : vector<8x128xf32>
    %c416 = arith.constant 416 : index
    %c0_23 = arith.constant 0 : index
    %41 = vector.load %arg2[%c416, %c0_23] : memref<1312x128xbf16, #tpu.memory_space<vmem>>, vector<128x128xbf16>
    %cst_24 = arith.constant dense<0.000000e+00> : vector<8x128xf32>
    %42 = tpu.matmul %17, %41, %cst_24 {dimension_numbers = #tpu.dot_dimension_numbers<[1], [0], [0], [1], [0, 0, 1, 1], [], []>} : vector<8x128xbf16>, vector<128x128xbf16>, vector<8x128xf32> -> vector<8x128xf32>
    %c4 = arith.constant 4 : index
    %c0_25 = arith.constant 0 : index
    %43 = vector.load %arg3[%c4, %c0_25] : memref<16x128xf32, #tpu.memory_space<vmem>>, vector<1x128xf32>
    %44 = vector.broadcast %43 : vector<1x128xf32> to vector<8x128xf32>
    %45 = arith.addf %42, %44 : vector<8x128xf32>
    %cst_26 = arith.constant 0.000000e+00 : f32
    %46 = vector.broadcast %cst_26 : f32 to vector<8x128xf32>
    %47 = arith.maximumf %45, %46 : vector<8x128xf32>
    %48 = arith.truncf %47 : vector<8x128xf32> to vector<8x128xbf16>
    %c928 = arith.constant 928 : index
    %c0_27 = arith.constant 0 : index
    %49 = vector.load %arg2[%c928, %c0_27] : memref<1312x128xbf16, #tpu.memory_space<vmem>>, vector<128x128xbf16>
    %cst_28 = arith.constant dense<0.000000e+00> : vector<8x128xf32>
    %50 = tpu.matmul %48, %49, %cst_28 {dimension_numbers = #tpu.dot_dimension_numbers<[1], [0], [0], [1], [0, 0, 1, 1], [], []>} : vector<8x128xbf16>, vector<128x128xbf16>, vector<8x128xf32> -> vector<8x128xf32>
    %51 = arith.addf %40, %50 : vector<8x128xf32>
    %c544 = arith.constant 544 : index
    %c0_29 = arith.constant 0 : index
    %52 = vector.load %arg2[%c544, %c0_29] : memref<1312x128xbf16, #tpu.memory_space<vmem>>, vector<128x128xbf16>
    %cst_30 = arith.constant dense<0.000000e+00> : vector<8x128xf32>
    %53 = tpu.matmul %17, %52, %cst_30 {dimension_numbers = #tpu.dot_dimension_numbers<[1], [0], [0], [1], [0, 0, 1, 1], [], []>} : vector<8x128xbf16>, vector<128x128xbf16>, vector<8x128xf32> -> vector<8x128xf32>
    %c5 = arith.constant 5 : index
    %c0_31 = arith.constant 0 : index
    %54 = vector.load %arg3[%c5, %c0_31] : memref<16x128xf32, #tpu.memory_space<vmem>>, vector<1x128xf32>
    %55 = vector.broadcast %54 : vector<1x128xf32> to vector<8x128xf32>
    %56 = arith.addf %53, %55 : vector<8x128xf32>
    %cst_32 = arith.constant 0.000000e+00 : f32
    %57 = vector.broadcast %cst_32 : f32 to vector<8x128xf32>
    %58 = arith.maximumf %56, %57 : vector<8x128xf32>
    %59 = arith.truncf %58 : vector<8x128xf32> to vector<8x128xbf16>
    %c1056 = arith.constant 1056 : index
    %c0_33 = arith.constant 0 : index
    %60 = vector.load %arg2[%c1056, %c0_33] : memref<1312x128xbf16, #tpu.memory_space<vmem>>, vector<128x128xbf16>
    %cst_34 = arith.constant dense<0.000000e+00> : vector<8x128xf32>
    %61 = tpu.matmul %59, %60, %cst_34 {dimension_numbers = #tpu.dot_dimension_numbers<[1], [0], [0], [1], [0, 0, 1, 1], [], []>} : vector<8x128xbf16>, vector<128x128xbf16>, vector<8x128xf32> -> vector<8x128xf32>
    %62 = arith.addf %51, %61 : vector<8x128xf32>
    %c6 = arith.constant 6 : index
    %c0_35 = arith.constant 0 : index
    %63 = vector.load %arg3[%c6, %c0_35] : memref<16x128xf32, #tpu.memory_space<vmem>>, vector<1x128xf32>
    %64 = vector.broadcast %63 : vector<1x128xf32> to vector<8x128xf32>
    %65 = arith.addf %62, %64 : vector<8x128xf32>
    %cst_36 = arith.constant 0.000000e+00 : f32
    %66 = vector.broadcast %cst_36 : f32 to vector<8x128xf32>
    %67 = arith.maximumf %65, %66 : vector<8x128xf32>
    %68 = arith.truncf %67 : vector<8x128xf32> to vector<8x128xbf16>
    %c1184 = arith.constant 1184 : index
    %c0_37 = arith.constant 0 : index
    %69 = vector.load %arg2[%c1184, %c0_37] : memref<1312x128xbf16, #tpu.memory_space<vmem>>, vector<128x128xbf16>
    %cst_38 = arith.constant dense<0.000000e+00> : vector<8x128xf32>
    %70 = tpu.matmul %68, %69, %cst_38 {dimension_numbers = #tpu.dot_dimension_numbers<[1], [0], [0], [1], [0, 0, 1, 1], [], []>} : vector<8x128xbf16>, vector<128x128xbf16>, vector<8x128xf32> -> vector<8x128xf32>
    %c7 = arith.constant 7 : index
    %c0_39 = arith.constant 0 : index
    %71 = vector.load %arg3[%c7, %c0_39] : memref<16x128xf32, #tpu.memory_space<vmem>>, vector<1x128xf32>
    %72 = vector.broadcast %71 : vector<1x128xf32> to vector<8x128xf32>
    %73 = arith.addf %70, %72 : vector<8x128xf32>
    %cst_40 = arith.constant 0.000000e+00 : f32
    %74 = vector.broadcast %cst_40 : f32 to vector<8x128xf32>
    %75 = arith.maximumf %73, %74 : vector<8x128xf32>
    %c8 = arith.constant 8 : index
    %c0_41 = arith.constant 0 : index
    %76 = vector.load %arg3[%c8, %c0_41] : memref<16x128xf32, #tpu.memory_space<vmem>>, vector<1x128xf32>
    %77 = vector.broadcast %76 : vector<1x128xf32> to vector<8x128xf32>
    %78 = arith.mulf %75, %77 : vector<8x128xf32>
    %cst_42 = arith.constant dense<0.000000e+00> : vector<8xf32>
    %79 = vector.multi_reduction <add>, %78, %cst_42 [1] : vector<8x128xf32> to vector<8xf32>
    %80 = vector.shape_cast %79 : vector<8xf32> to vector<8x1xf32>
    %c9 = arith.constant 9 : index
    %c0_43 = arith.constant 0 : index
    %81 = vector.load %arg3[%c9, %c0_43] : memref<16x128xf32, #tpu.memory_space<vmem>>, vector<1x1xf32>
    %82 = vector.broadcast %81 : vector<1x1xf32> to vector<8x1xf32>
    %83 = arith.addf %80, %82 : vector<8x1xf32>
    %84 = arith.negf %83 : vector<8x1xf32>
    %85 = math.exp %84 : vector<8x1xf32>
    %cst_44 = arith.constant 1.000000e+00 : f32
    %86 = vector.broadcast %cst_44 : f32 to vector<8x1xf32>
    %87 = arith.addf %86, %85 : vector<8x1xf32>
    %88 = arith.divf %86, %87 : vector<8x1xf32>
    %c0_45 = arith.constant 0 : index
    %c0_46 = arith.constant 0 : index
    %89 = vector.load %arg4[%c0_45, %c0_46] : memref<8x1xf32, #tpu.memory_space<vmem>>, vector<8x1xf32>
    tpu.vector_store %arg4[%c0_45, %c0_46], %88 {strides = array<i32>} : memref<8x1xf32, #tpu.memory_space<vmem>>, vector<8x1xf32>,
    return
  }
  func.func @transform_0(%arg0: i32) -> (i32, i32) {
    %c0_i32 = arith.constant 0 : i32
    %c0_i32_0 = arith.constant 0 : i32
    return %arg0, %c0_i32 : i32, i32
  }
  func.func @transform_1(%arg0: i32) -> (i32, i32) {
    %c0_i32 = arith.constant 0 : i32
    %c0_i32_0 = arith.constant 0 : i32
    %c0_i32_1 = arith.constant 0 : i32
    return %c0_i32, %c0_i32_0 : i32, i32
  }
  func.func @transform_2(%arg0: i32) -> (i32, i32) {
    %c0_i32 = arith.constant 0 : i32
    %c0_i32_0 = arith.constant 0 : i32
    %c0_i32_1 = arith.constant 0 : i32
    return %c0_i32, %c0_i32_0 : i32, i32
  }
  func.func @transform_3(%arg0: i32) -> (i32, i32) {
    %c0_i32 = arith.constant 0 : i32
    %c0_i32_0 = arith.constant 0 : i32
    return %arg0, %c0_i32 : i32, i32
  }
}

</mosaic_0001>

<llo_original>
// kernel: tpu_custom_call.1
$region0: #{tpu_custom_call.1}
  #allocation0 [shape = 'u32[]', space=smem, size = 0x4, offset = 0x4, fixed_abs, tag = 'smem constant byte address 0x4 - core index']
  #allocation1 [shape = 'u32[144,128]{1,0:T(1,128)}', space=vmem, size = 0x12000, scoped, tag = 'internal scratch']
  %s0 = inlined_call_operand.hbm [shape: f32[16,32], index: 0, kind: input, shape index: {}]
  %s1 = inlined_call_operand.hbm [shape: bf16[1312,128], index: 1, kind: input, shape index: {}]
  %s2 = inlined_call_operand.hbm [shape: f32[16,128], index: 2, kind: input, shape index: {}]
  %s3 = inlined_call_operand.vmem [shape: f32[16,1], index: 3, kind: output, shape index: {}]
  %s4 = sld [smem:[#allocation0]]
  $region57: #{tpu_custom_call.1} parent=0
    _
  %s6 = ssub.s32 1, %s4
  %s7 = scalar_select 0, %s6, %s4
  $region1: #{tpu_custom_call.1} parent=0
    #allocation2 [shape = 'u8[8192]{0}', space=vmem, size = 0x2000, scoped, tag = 'input window, operand 0']
    #allocation3 [shape = 's32[2]{0}', space=sflag, size = 0x8, scoped, tag = 'scoped memory for tpu_custom_call.1']
    #allocation4 [shape = 'u8[335872]{0}', space=vmem, size = 0x52000, scoped, tag = 'input window, operand 1, single buffered']
    #allocation5 [shape = 's32[1]{0}', space=sflag, size = 0x4, scoped, tag = 'scoped memory for tpu_custom_call.1']
    #allocation6 [shape = 'u8[8192]{0}', space=vmem, size = 0x2000, scoped, tag = 'input window, operand 2, single buffered']
    %8 = vsyncpa [#allocation3], 0
    %s9 = scalar_lea.sflag [#allocation3], 1
    %10 = vsyncpa %s9, 0
    %11 = vsyncpa [#allocation5], 0
    loop: start=0, step=1, limit=4
    $region2: #{tpu_custom_call.1} parent=1 // loop_pre_header
      _
    $region3: #{tpu_custom_call.1} parent=1 // loop_header
      %s13 = sphi 0, %s17
      %p14 = scmp.ge.s32.totalorder %s13, 4
      %s23 = sphi 0, %s25
      %s26 = sphi 0, %s23
      %s27 = sphi 0, %s26
      %s43 = sphi 0, %s27
      %s47 = sphi 0, %s47
      %s49 = sphi 0, %s47
      %s50 = sphi 0, %s49
      %s64 = sphi 0, %s50
      %s68 = sphi 0, %s68
      %s70 = sphi 0, %s68
      %s71 = sphi 0, %s70
      %s85 = sphi 0, %s71
      %s91 = sphi 0, %s93
      %s94 = sphi 0, %s91
      %s95 = sphi 0, %s94
      %s111 = sphi 0, %s95
    $region4: #{tpu_custom_call.1} parent=1 // loop_header_branch
      %16 = sbr.rel (%p14) target = $region8
    $region5: #{tpu_custom_call.1} parent=1 // loop_body
      %s18 = ssub.s32 %s13, 1
      %s19 = ssub.s32 %s13, 2
      %s20 = sadd.s32 %s13, 1
      %s21 = ssub.s32 %s13, %s20
      %p22 = scmp.eq.s32.totalorder %s21, 0
      %s24 = sadd.s32 %s23, 1
      %s25 = scalar_select %p22, %s23, %s24
      %p28 = pneg %p22
      %p29 = scmp.eq.s32.totalorder %s13, 1
      %p30 = por %p28, %p29
      %p31 = scmp.ne.s32.totalorder %s23, %s26
      %p32 = scmp.eq.s32.totalorder %s13, 0
      %p33 = por %p31, %p32
      %p34 = scmp.ne.s32.totalorder %s23, %s26
      %p35 = scmp.eq.s32.totalorder %s18, 1
      %p36 = por %p34, %p35
      %p37 = scmp.ne.s32.totalorder %s26, %s27
      %p38 = scmp.eq.s32.totalorder %s18, 0
      %p39 = por %p37, %p38
      %p40 = scmp.ne.s32.totalorder %s26, %s27
      %p41 = scmp.eq.s32.totalorder %s19, 1
      %p42 = por %p40, %p41
      %p44 = scmp.ne.s32.totalorder %s27, %s43
      %p45 = scmp.eq.s32.totalorder %s19, 0
      %p46 = por %p44, %p45
      %s48 = sadd.s32 %s47, 1
      %p51 = scmp.eq.s32.totalorder %s13, 1
      %p52 = scmp.ne.s32.totalorder %s47, %s49
      %p53 = scmp.eq.s32.totalorder %s13, 0
      %p54 = por %p52, %p53
      %p55 = scmp.ne.s32.totalorder %s47, %s49
      %p56 = scmp.eq.s32.totalorder %s18, 1
      %p57 = por %p55, %p56
      %p58 = scmp.ne.s32.totalorder %s49, %s50
      %p59 = scmp.eq.s32.totalorder %s18, 0
      %p60 = por %p58, %p59
      %p61 = scmp.ne.s32.totalorder %s49, %s50
      %p62 = scmp.eq.s32.totalorder %s19, 1
      %p63 = por %p61, %p62
      %p65 = scmp.ne.s32.totalorder %s50, %s64
      %p66 = scmp.eq.s32.totalorder %s19, 0
      %p67 = por %p65, %p66
      %s69 = sadd.s32 %s68, 1
      %p72 = scmp.eq.s32.totalorder %s13, 1
      %p73 = scmp.ne.s32.totalorder %s68, %s70
      %p74 = scmp.eq.s32.totalorder %s13, 0
      %p75 = por %p73, %p74
      %p76 = scmp.ne.s32.totalorder %s68, %s70
      %p77 = scmp.eq.s32.totalorder %s18, 1
      %p78 = por %p76, %p77
      %p79 = scmp.ne.s32.totalorder %s70, %s71
      %p80 = scmp.eq.s32.totalorder %s18, 0
      %p81 = por %p79, %p80
      %p82 = scmp.ne.s32.totalorder %s70, %s71
      %p83 = scmp.eq.s32.totalorder %s19, 1
      %p84 = por %p82, %p83
      %p86 = scmp.ne.s32.totalorder %s71, %s85
      %p87 = scmp.eq.s32.totalorder %s19, 0
      %p88 = por %p86, %p87
      %s89 = ssub.s32 %s13, %s20
      %p90 = scmp.eq.s32.totalorder %s89, 0
      %s92 = sadd.s32 %s91, 1
      %s93 = scalar_select %p90, %s91, %s92
      %p96 = pneg %p90
      %p97 = scmp.eq.s32.totalorder %s13, 1
      %p98 = por %p96, %p97
      %p99 = scmp.ne.s32.totalorder %s91, %s94
      %p100 = scmp.eq.s32.totalorder %s13, 0
      %p101 = por %p99, %p100
      %p102 = scmp.ne.s32.totalorder %s91, %s94
      %p103 = scmp.eq.s32.totalorder %s18, 1
      %p104 = por %p102, %p103
      %p105 = scmp.ne.s32.totalorder %s94, %s95
      %p106 = scmp.eq.s32.totalorder %s18, 0
      %p107 = por %p105, %p106
      %p108 = scmp.ne.s32.totalorder %s94, %s95
      %p109 = scmp.eq.s32.totalorder %s19, 1
      %p110 = por %p108, %p109
      %p112 = scmp.ne.s32.totalorder %s95, %s111
      %p113 = scmp.eq.s32.totalorder %s19, 0
      %p114 = por %p112, %p113
      %p115 = scmp.le.s32.totalorder 1, %s13
      %p116 = scmp.lt.s32.totalorder %s13, 3
      %p117 = pnand %p115, %p116
      %p118 = pneg %p117
      // Predicated region
      $region9: #{tpu_custom_call.1} parent=5 // pred_check
        _
      $region10: #{tpu_custom_call.1} parent=5 // pred_check_branch
        %120 = sbr.rel (%p117) target = $region12
      $region11: #{tpu_custom_call.1} parent=5 // pred_region
        %s121 = ssub.s32 %s13, 1
        // Predicated region
        $region13: #{tpu_custom_call.1} parent=11 // pred_check
          %p122 = pneg %p60
        $region14: #{tpu_custom_call.1} parent=11 // pred_check_branch
          %124 = sbr.rel (%p122) target = $region16
        $region15: #{tpu_custom_call.1} parent=11 // pred_region
          %s126 = ssub.s32 10496, 10496
          %127 = vsyncadd [#allocation5], %s126
          %s128 = sshll.u32 [#allocation4], 4
          %s129 = int_to_ptr.vmem [resolvable:$true] %s128
          %134 = dma.hbm_to_vmem [thread:$0]  %s1, 10496, %s129, [#allocation5], 64, 64, 4
        $region16: #{tpu_custom_call.1} parent=11 // pred_fallthru
          _
        // Predicated region
        $region17: #{tpu_custom_call.1} parent=11 // pred_check
          %p135 = pneg %p81
        $region18: #{tpu_custom_call.1} parent=11 // pred_check_branch
          %137 = sbr.rel (%p135) target = $region20
        $region19: #{tpu_custom_call.1} parent=11 // pred_region
          %s139 = ssub.s32 256, 256
          %140 = vsyncadd [#allocation5], %s139
          %s141 = sshll.u32 [#allocation6], 4
          %s142 = int_to_ptr.vmem [resolvable:$true] %s141
          %147 = dma.hbm_to_vmem [thread:$0]  %s2, 256, %s142, [#allocation5], 128, 128, 8
        $region20: #{tpu_custom_call.1} parent=11 // pred_fallthru
          _
      $region12: #{tpu_custom_call.1} parent=5 // pred_fallthru
        _
      %p148 = scmp.lt.s32.totalorder %s13, 2
      // Predicated region
      $region21: #{tpu_custom_call.1} parent=5 // pred_check
        %p149 = pneg %p148
      $region22: #{tpu_custom_call.1} parent=5 // pred_check_branch
        %151 = sbr.rel (%p149) target = $region24
      $region23: #{tpu_custom_call.1} parent=5 // pred_region
        // Predicated region
        $region25: #{tpu_custom_call.1} parent=23 // pred_check
          %p152 = pneg %p33
        $region26: #{tpu_custom_call.1} parent=23 // pred_check_branch
          %154 = sbr.rel (%p152) target = $region28
        $region27: #{tpu_custom_call.1} parent=23 // pred_region
          %s155 = sand.u32 %s23, 1
          %s156 = scalar_lea.sflag [#allocation3], %s155
          %s157 = sand.u32 %s23, 1
          %s158 = smul.addr %s157, 8
          %s159 = scalar_lea.vmem [#allocation2], %s158
          %s161 = ssub.s32 128, 128
          %162 = vsyncadd %s156, %s161
          %s163 = smul.addr %s13, 128
          %s164 = scalar_lea.hbm %s0, %s163
          %s166 = sshll.u32 %s159, 4
          %s167 = int_to_ptr.vmem [resolvable:$true] %s166
          %169 = dma.hbm_to_vmem [thread:$0]  %s164, 128, %s167, %s156
        $region28: #{tpu_custom_call.1} parent=23 // pred_fallthru
          _
      $region24: #{tpu_custom_call.1} parent=5 // pred_fallthru
        _
      %p170 = scmp.le.s32.totalorder 1, %s13
      %p171 = scmp.lt.s32.totalorder %s13, 3
      %p172 = pnand %p170, %p171
      %p173 = pneg %p172
      // Predicated region
      $region29: #{tpu_custom_call.1} parent=5 // pred_check
        _
      $region30: #{tpu_custom_call.1} parent=5 // pred_check_branch
        %175 = sbr.rel (%p172) target = $region32
      $region31: #{tpu_custom_call.1} parent=5 // pred_region
        %s176 = ssub.s32 %s13, 1
        %s177 = sand.u32 %s26, 1
        %s178 = scalar_lea.sflag [#allocation3], %s177
        %s179 = sand.u32 %s26, 1
        %s180 = smul.addr %s179, 8
        %s181 = scalar_lea.vmem [#allocation2], %s180
        // Predicated region
        $region33: #{tpu_custom_call.1} parent=31 // pred_check
          %p182 = pneg %p39
        $region34: #{tpu_custom_call.1} parent=31 // pred_check_branch
          %184 = sbr.rel (%p182) target = $region36
        $region35: #{tpu_custom_call.1} parent=31 // pred_region
          %185 = dma.done %s178, 128
        $region36: #{tpu_custom_call.1} parent=31 // pred_fallthru
          _
        // Predicated region
        $region37: #{tpu_custom_call.1} parent=31 // pred_check
          %p186 = pneg %p60
        $region38: #{tpu_custom_call.1} parent=31 // pred_check_branch
          %188 = sbr.rel (%p186) target = $region40
        $region39: #{tpu_custom_call.1} parent=31 // pred_region
          %189 = dma.done [#allocation5], 10496
        $region40: #{tpu_custom_call.1} parent=31 // pred_fallthru
          _
        // Predicated region
        $region41: #{tpu_custom_call.1} parent=31 // pred_check
          %p190 = pneg %p81
        $region42: #{tpu_custom_call.1} parent=31 // pred_check_branch
          %192 = sbr.rel (%p190) target = $region44
        $region43: #{tpu_custom_call.1} parent=31 // pred_region
          %193 = dma.done [#allocation5], 256
        $region44: #{tpu_custom_call.1} parent=31 // pred_fallthru
          _
        %s194 = sand.u32 %s26, 1
        %s195 = scalar_lea.sflag [#allocation3], %s194
        %s196 = sand.u32 %s26, 1
        %s197 = smul.addr %s196, 8
        %s198 = scalar_lea.vmem [#allocation2], %s197
        %p199 = pneg %p39
        %p200 = pneg %p36
        %p201 = pneg %p60
        %p202 = pneg %p57
        %p203 = pneg %p81
        %p204 = pneg %p78
        %p205 = pneg %p107
        %p206 = pneg %p104
        %p207 = scmp.lt.s32.totalorder %s18, 1
        %s208 = scalar_select %p207, %s18, 1
        %s209 = smul.addr %s208, 8
        %s210 = scalar_lea.vmem %s3, %s209
        %p211 = scmp.lt.s32.totalorder %s18, 1
        %s212 = scalar_select %p211, %s18, 1
        %s213 = smul.addr %s212, 8
        %s214 = scalar_lea.vmem %s3, %s213
        %v216 = vld [vmem:[%s181] sm:$0xff]
        %v217 = vpack.c.bf16 %v216, %v216
        %v218 = vld [vmem:[#allocation4] sm:$0xf]
        %v219 = vld [vmem:[#allocation4 + $0x4] sm:$0xf]
        %v220 = vld [vmem:[#allocation4 + $0x8] sm:$0xf]
        %v221 = vld [vmem:[#allocation4 + $0xc] sm:$0xf]
        %v222 = vld [vmem:[#allocation6] sm:$0x1]
        %v223 = vlaneseq
        %v224 = vshrl.u32 %v223, 7
        %v225 = vsub.s32 0, %v224
        %v226 = vrot.slane %v222, %v225
        %v231 = vunpack.c.l.b16 %v218
        %v232 = vunpack.c.l.b16 %v219
        %v233 = vunpack.c.l.b16 %v220
        %v234 = vunpack.c.l.b16 %v221
        %v235 = vpack.c.b16 %v232, %v231
        %v236 = vpack.c.b16 %v234, %v233
        %vm239 = vcmask 261120
        %v241 = vsel %vm239, %v217, 0
        %243 = vmatprep.subr.bf16.mxu0 0
        %244 = vmatpush1.bf16.msra.mxu0 0
        %245 = vmatprep.subr.bf16.mxu0 0
        %246 = vmatpush1.bf16.msra.mxu0 0
        %247 = vmatprep.subr.bf16.mxu0 0
        %248 = vmatpush1.bf16.msra.mxu0 0
        %249 = vmatprep.subr.bf16.mxu0 0
        %250 = vmatpush1.bf16.msra.mxu0 0
        %251 = vmatprep.subr.bf16.mxu0 0
        %252 = vmatpush1.bf16.msra.mxu0 0
        %253 = vmatprep.subr.bf16.mxu0 0
        %254 = vmatpush1.bf16.msra.mxu0 0
        %255 = vmatprep.subr.bf16.mxu0 0
        %256 = vmatpush1.bf16.msra.mxu0 %v236
        %257 = vmatprep.subr.bf16.mxu0 0
        %258 = vmatpush1.bf16.msra.mxu0 %v235
        %259 = vmatprep.subr.bf16.mxu0 0
        %260 = vmatpush2.bf16.msra.mxu0 0
        %261 = vmatprep.subr.bf16.mxu0 0
        %262 = vmatpush2.bf16.msra.mxu0 0
        %263 = vmatprep.subr.bf16.mxu0 0
        %264 = vmatpush2.bf16.msra.mxu0 0
        %265 = vmatprep.subr.bf16.mxu0 0
        %266 = vmatpush2.bf16.msra.mxu0 0
        %267 = vmatprep.subr.bf16.mxu0 0
        %268 = vmatpush2.bf16.msra.mxu0 0
        %269 = vmatprep.subr.bf16.mxu0 0
        %270 = vmatpush2.bf16.msra.mxu0 0
        %271 = vmatprep.subr.bf16.mxu0 0
        %272 = vmatpush2.bf16.msra.mxu0 0
        %273 = vmatprep.subr.bf16.mxu0 0
        %274 = vmatpush2.bf16.msra.mxu0 0
        %275 = vmatprep.mubr.bf16.mxu0 0
        %276 = vmatmul.mubr.bf16.gmra.mxu0 %v241
        %v277 = vpop.f32.mrf.mxu0
        %v278 = vadd.f32 %v226, %v277
        %v279 = vpop.f32.mrf.mxu0
        %v280 = vpop.f32.mrf.mxu0
        %v281 = vpop.f32.mrf.mxu0
        %282 = vdwg.mxu0
        %v283 = vmax.f32 %v278, 0.0
        %v284 = vpack.c.bf16 %v283, %v283
        %v285 = vld [vmem:[#allocation4 + $0x10] sm:$0xf]
        %v286 = vld [vmem:[#allocation4 + $0x14] sm:$0xf]
        %v287 = vld [vmem:[#allocation4 + $0x18] sm:$0xf]
        %v288 = vld [vmem:[#allocation4 + $0x1c] sm:$0xf]
        %v289 = vld [vmem:[#allocation4 + $0x20] sm:$0xf]
        %v290 = vld [vmem:[#allocation4 + $0x24] sm:$0xf]
        %v291 = vld [vmem:[#allocation4 + $0x28] sm:$0xf]
        %v292 = vld [vmem:[#allocation4 + $0x2c] sm:$0xf]
        %v293 = vld [vmem:[#allocation4 + $0x30] sm:$0xf]
        %v294 = vld [vmem:[#allocation4 + $0x34] sm:$0xf]
        %v295 = vld [vmem:[#allocation4 + $0x38] sm:$0xf]
        %v296 = vld [vmem:[#allocation4 + $0x3c] sm:$0xf]
        %v297 = vld [vmem:[#allocation4 + $0x40] sm:$0xf]
        %v298 = vld [vmem:[#allocation4 + $0x44] sm:$0xf]
        %v299 = vld [vmem:[#allocation4 + $0x48] sm:$0xf]
        %v300 = vld [vmem:[#allocation4 + $0x4c] sm:$0xf]
        %v301 = vld [vmem:[#allocation6 + $0x1] sm:$0x1]
        %v302 = vlaneseq
        %v303 = vshrl.u32 %v302, 7
        %v304 = vsub.s32 0, %v303
        %v305 = vrot.slane %v301, %v304
        %v322 = vunpack.c.l.b16 %v285
        %v323 = vunpack.c.l.b16 %v286
        %v324 = vunpack.c.l.b16 %v287
        %v325 = vunpack.c.l.b16 %v288
        %v326 = vunpack.c.l.b16 %v289
        %v327 = vunpack.c.l.b16 %v290
        %v328 = vunpack.c.l.b16 %v291
        %v329 = vunpack.c.l.b16 %v292
        %v330 = vunpack.c.l.b16 %v293
        %v331 = vunpack.c.l.b16 %v294
        %v332 = vunpack.c.l.b16 %v295
        %v333 = vunpack.c.l.b16 %v296
        %v334 = vunpack.c.l.b16 %v297
        %v335 = vunpack.c.l.b16 %v298
        %v336 = vunpack.c.l.b16 %v299
        %v337 = vunpack.c.l.b16 %v300
        %v338 = vpack.c.b16 %v323, %v322
        %v339 = vpack.c.b16 %v325, %v324
        %v340 = vpack.c.b16 %v327, %v326
        %v341 = vpack.c.b16 %v329, %v328
        %v342 = vpack.c.b16 %v331, %v330
        %v343 = vpack.c.b16 %v333, %v332
        %v344 = vpack.c.b16 %v335, %v334
        %v345 = vpack.c.b16 %v337, %v336
        %354 = vmatprep.subr.bf16.mxu0 0
        %355 = vmatpush1.bf16.msra.mxu0 %v345
        %356 = vmatprep.subr.bf16.mxu0 0
        %357 = vmatpush1.bf16.msra.mxu0 %v344
        %358 = vmatprep.subr.bf16.mxu0 0
        %359 = vmatpush1.bf16.msra.mxu0 %v343
        %360 = vmatprep.subr.bf16.mxu0 0
        %361 = vmatpush1.bf16.msra.mxu0 %v342
        %362 = vmatprep.subr.bf16.mxu0 0
        %363 = vmatpush1.bf16.msra.mxu0 %v341
        %364 = vmatprep.subr.bf16.mxu0 0
        %365 = vmatpush1.bf16.msra.mxu0 %v340
        %366 = vmatprep.subr.bf16.mxu0 0
        %367 = vmatpush1.bf16.msra.mxu0 %v339
        %368 = vmatprep.subr.bf16.mxu0 0
        %369 = vmatpush1.bf16.msra.mxu0 %v338
        %370 = vmatprep.subr.bf16.mxu0 0
        %371 = vmatpush2.bf16.msra.mxu0 0
        %372 = vmatprep.subr.bf16.mxu0 0
        %373 = vmatpush2.bf16.msra.mxu0 0
        %374 = vmatprep.subr.bf16.mxu0 0
        %375 = vmatpush2.bf16.msra.mxu0 0
        %376 = vmatprep.subr.bf16.mxu0 0
        %377 = vmatpush2.bf16.msra.mxu0 0
        %378 = vmatprep.subr.bf16.mxu0 0
        %379 = vmatpush2.bf16.msra.mxu0 0
        %380 = vmatprep.subr.bf16.mxu0 0
        %381 = vmatpush2.bf16.msra.mxu0 0
        %382 = vmatprep.subr.bf16.mxu0 0
        %383 = vmatpush2.bf16.msra.mxu0 0
        %384 = vmatprep.subr.bf16.mxu0 0
        %385 = vmatpush2.bf16.msra.mxu0 0
        %386 = vmatprep.mubr.bf16.mxu0 0
        %387 = vmatmul.mubr.bf16.gmra.mxu0 %v284
        %v388 = vpop.f32.mrf.mxu0
        %v389 = vadd.f32 %v305, %v388
        %v390 = vpop.f32.mrf.mxu0
        %v391 = vpop.f32.mrf.mxu0
        %v392 = vpop.f32.mrf.mxu0
        %393 = vdwg.mxu0
        %v394 = vmax.f32 %v389, 0.0
        %v395 = vpack.c.bf16 %v394, %v394
        %v396 = vld [vmem:[#allocation4 + $0x50] sm:$0xf]
        %v397 = vld [vmem:[#allocation4 + $0x54] sm:$0xf]
        %v398 = vld [vmem:[#allocation4 + $0x58] sm:$0xf]
        %v399 = vld [vmem:[#allocation4 + $0x5c] sm:$0xf]
        %v400 = vld [vmem:[#allocation4 + $0x60] sm:$0xf]
        %v401 = vld [vmem:[#allocation4 + $0x64] sm:$0xf]
        %v402 = vld [vmem:[#allocation4 + $0x68] sm:$0xf]
        %v403 = vld [vmem:[#allocation4 + $0x6c] sm:$0xf]
        %v404 = vld [vmem:[#allocation4 + $0x70] sm:$0xf]
        %v405 = vld [vmem:[#allocation4 + $0x74] sm:$0xf]
        %v406 = vld [vmem:[#allocation4 + $0x78] sm:$0xf]
        %v407 = vld [vmem:[#allocation4 + $0x7c] sm:$0xf]
        %v408 = vld [vmem:[#allocation4 + $0x80] sm:$0xf]
        %v409 = vld [vmem:[#allocation4 + $0x84] sm:$0xf]
        %v410 = vld [vmem:[#allocation4 + $0x88] sm:$0xf]
        %v411 = vld [vmem:[#allocation4 + $0x8c] sm:$0xf]
        %v412 = vld [vmem:[#allocation6 + $0x2] sm:$0x1]
        %v413 = vlaneseq
        %v414 = vshrl.u32 %v413, 7
        %v415 = vsub.s32 0, %v414
        %v416 = vrot.slane %v412, %v415
        %v433 = vunpack.c.l.b16 %v396
        %v434 = vunpack.c.l.b16 %v397
        %v435 = vunpack.c.l.b16 %v398
        %v436 = vunpack.c.l.b16 %v399
        %v437 = vunpack.c.l.b16 %v400
        %v438 = vunpack.c.l.b16 %v401
        %v439 = vunpack.c.l.b16 %v402
        %v440 = vunpack.c.l.b16 %v403
        %v441 = vunpack.c.l.b16 %v404
        %v442 = vunpack.c.l.b16 %v405
        %v443 = vunpack.c.l.b16 %v406
        %v444 = vunpack.c.l.b16 %v407
        %v445 = vunpack.c.l.b16 %v408
        %v446 = vunpack.c.l.b16 %v409
        %v447 = vunpack.c.l.b16 %v410
        %v448 = vunpack.c.l.b16 %v411
        %v449 = vpack.c.b16 %v434, %v433
        %v450 = vpack.c.b16 %v436, %v435
        %v451 = vpack.c.b16 %v438, %v437
        %v452 = vpack.c.b16 %v440, %v439
        %v453 = vpack.c.b16 %v442, %v441
        %v454 = vpack.c.b16 %v444, %v443
        %v455 = vpack.c.b16 %v446, %v445
        %v456 = vpack.c.b16 %v448, %v447
        %465 = vmatprep.subr.bf16.mxu0 0
        %466 = vmatpush1.bf16.msra.mxu0 %v456
        %467 = vmatprep.subr.bf16.mxu0 0
        %468 = vmatpush1.bf16.msra.mxu0 %v455
        %469 = vmatprep.subr.bf16.mxu0 0
        %470 = vmatpush1.bf16.msra.mxu0 %v454
        %471 = vmatprep.subr.bf16.mxu0 0
        %472 = vmatpush1.bf16.msra.mxu0 %v453
        %473 = vmatprep.subr.bf16.mxu0 0
        %474 = vmatpush1.bf16.msra.mxu0 %v452
        %475 = vmatprep.subr.bf16.mxu0 0
        %476 = vmatpush1.bf16.msra.mxu0 %v451
        %477 = vmatprep.subr.bf16.mxu0 0
        %478 = vmatpush1.bf16.msra.mxu0 %v450
        %479 = vmatprep.subr.bf16.mxu0 0
        %480 = vmatpush1.bf16.msra.mxu0 %v449
        %481 = vmatprep.subr.bf16.mxu0 0
        %482 = vmatpush2.bf16.msra.mxu0 0
        %483 = vmatprep.subr.bf16.mxu0 0
        %484 = vmatpush2.bf16.msra.mxu0 0
        %485 = vmatprep.subr.bf16.mxu0 0
        %486 = vmatpush2.bf16.msra.mxu0 0
        %487 = vmatprep.subr.bf16.mxu0 0
        %488 = vmatpush2.bf16.msra.mxu0 0
        %489 = vmatprep.subr.bf16.mxu0 0
        %490 = vmatpush2.bf16.msra.mxu0 0
        %491 = vmatprep.subr.bf16.mxu0 0
        %492 = vmatpush2.bf16.msra.mxu0 0
        %493 = vmatprep.subr.bf16.mxu0 0
        %494 = vmatpush2.bf16.msra.mxu0 0
        %495 = vmatprep.subr.bf16.mxu0 0
        %496 = vmatpush2.bf16.msra.mxu0 0
        %497 = vmatprep.mubr.bf16.mxu0 0
        %498 = vmatmul.mubr.bf16.gmra.mxu0 %v395
        %v499 = vpop.f32.mrf.mxu0
        %v500 = vadd.f32 %v416, %v499
        %v501 = vpop.f32.mrf.mxu0
        %v502 = vpop.f32.mrf.mxu0
        %v503 = vpop.f32.mrf.mxu0
        %504 = vdwg.mxu0
        %v505 = vmax.f32 %v500, 0.0
        %v506 = vpack.c.bf16 %v505, %v505
        %v507 = vld [vmem:[#allocation4 + $0x150] sm:$0xf]
        %v508 = vld [vmem:[#allocation4 + $0x154] sm:$0xf]
        %v509 = vld [vmem:[#allocation4 + $0x158] sm:$0xf]
        %v510 = vld [vmem:[#allocation4 + $0x15c] sm:$0xf]
        %v511 = vld [vmem:[#allocation4 + $0x160] sm:$0xf]
        %v512 = vld [vmem:[#allocation4 + $0x164] sm:$0xf]
        %v513 = vld [vmem:[#allocation4 + $0x168] sm:$0xf]
        %v514 = vld [vmem:[#allocation4 + $0x16c] sm:$0xf]
        %v515 = vld [vmem:[#allocation4 + $0x170] sm:$0xf]
        %v516 = vld [vmem:[#allocation4 + $0x174] sm:$0xf]
        %v517 = vld [vmem:[#allocation4 + $0x178] sm:$0xf]
        %v518 = vld [vmem:[#allocation4 + $0x17c] sm:$0xf]
        %v519 = vld [vmem:[#allocation4 + $0x180] sm:$0xf]
        %v520 = vld [vmem:[#allocation4 + $0x184] sm:$0xf]
        %v521 = vld [vmem:[#allocation4 + $0x188] sm:$0xf]
        %v522 = vld [vmem:[#allocation4 + $0x18c] sm:$0xf]
        %v523 = vld [vmem:[#allocation4 + $0x90] sm:$0xf]
        %v524 = vld [vmem:[#allocation4 + $0x94] sm:$0xf]
        %v525 = vld [vmem:[#allocation4 + $0x98] sm:$0xf]
        %v526 = vld [vmem:[#allocation4 + $0x9c] sm:$0xf]
        %v527 = vld [vmem:[#allocation4 + $0xa0] sm:$0xf]
        %v528 = vld [vmem:[#allocation4 + $0xa4] sm:$0xf]
        %v529 = vld [vmem:[#allocation4 + $0xa8] sm:$0xf]
        %v530 = vld [vmem:[#allocation4 + $0xac] sm:$0xf]
        %v531 = vld [vmem:[#allocation4 + $0xb0] sm:$0xf]
        %v532 = vld [vmem:[#allocation4 + $0xb4] sm:$0xf]
        %v533 = vld [vmem:[#allocation4 + $0xb8] sm:$0xf]
        %v534 = vld [vmem:[#allocation4 + $0xbc] sm:$0xf]
        %v535 = vld [vmem:[#allocation4 + $0xc0] sm:$0xf]
        %v536 = vld [vmem:[#allocation4 + $0xc4] sm:$0xf]
        %v537 = vld [vmem:[#allocation4 + $0xc8] sm:$0xf]
        %v538 = vld [vmem:[#allocation4 + $0xcc] sm:$0xf]
        %v539 = vld [vmem:[#allocation6 + $0x3] sm:$0x1]
        %v540 = vlaneseq
        %v541 = vshrl.u32 %v540, 7
        %v542 = vsub.s32 0, %v541
        %v543 = vrot.slane %v539, %v542
        %v560 = vunpack.c.l.b16 %v523
        %v561 = vunpack.c.l.b16 %v524
        %v562 = vunpack.c.l.b16 %v525
        %v563 = vunpack.c.l.b16 %v526
        %v564 = vunpack.c.l.b16 %v527
        %v565 = vunpack.c.l.b16 %v528
        %v566 = vunpack.c.l.b16 %v529
        %v567 = vunpack.c.l.b16 %v530
        %v568 = vunpack.c.l.b16 %v531
        %v569 = vunpack.c.l.b16 %v532
        %v570 = vunpack.c.l.b16 %v533
        %v571 = vunpack.c.l.b16 %v534
        %v572 = vunpack.c.l.b16 %v535
        %v573 = vunpack.c.l.b16 %v536
        %v574 = vunpack.c.l.b16 %v537
        %v575 = vunpack.c.l.b16 %v538
        %v576 = vpack.c.b16 %v561, %v560
        %v577 = vpack.c.b16 %v563, %v562
        %v578 = vpack.c.b16 %v565, %v564
        %v579 = vpack.c.b16 %v567, %v566
        %v580 = vpack.c.b16 %v569, %v568
        %v581 = vpack.c.b16 %v571, %v570
        %v582 = vpack.c.b16 %v573, %v572
        %v583 = vpack.c.b16 %v575, %v574
        %592 = vmatprep.subr.bf16.mxu0 0
        %593 = vmatpush1.bf16.msra.mxu0 %v583
        %594 = vmatprep.subr.bf16.mxu0 0
        %595 = vmatpush1.bf16.msra.mxu0 %v582
        %596 = vmatprep.subr.bf16.mxu0 0
        %597 = vmatpush1.bf16.msra.mxu0 %v581
        %598 = vmatprep.subr.bf16.mxu0 0
        %599 = vmatpush1.bf16.msra.mxu0 %v580
        %600 = vmatprep.subr.bf16.mxu0 0
        %601 = vmatpush1.bf16.msra.mxu0 %v579
        %602 = vmatprep.subr.bf16.mxu0 0
        %603 = vmatpush1.bf16.msra.mxu0 %v578
        %604 = vmatprep.subr.bf16.mxu0 0
        %605 = vmatpush1.bf16.msra.mxu0 %v577
        %606 = vmatprep.subr.bf16.mxu0 0
        %607 = vmatpush1.bf16.msra.mxu0 %v576
        %608 = vmatprep.subr.bf16.mxu0 0
        %609 = vmatpush2.bf16.msra.mxu0 0
        %610 = vmatprep.subr.bf16.mxu0 0
        %611 = vmatpush2.bf16.msra.mxu0 0
        %612 = vmatprep.subr.bf16.mxu0 0
        %613 = vmatpush2.bf16.msra.mxu0 0
        %614 = vmatprep.subr.bf16.mxu0 0
        %615 = vmatpush2.bf16.msra.mxu0 0
        %616 = vmatprep.subr.bf16.mxu0 0
        %617 = vmatpush2.bf16.msra.mxu0 0
        %618 = vmatprep.subr.bf16.mxu0 0
        %619 = vmatpush2.bf16.msra.mxu0 0
        %620 = vmatprep.subr.bf16.mxu0 0
        %621 = vmatpush2.bf16.msra.mxu0 0
        %622 = vmatprep.subr.bf16.mxu0 0
        %623 = vmatpush2.bf16.msra.mxu0 0
        %624 = vmatprep.mubr.bf16.mxu0 0
        %625 = vmatmul.mubr.bf16.gmra.mxu0 %v395
        %v626 = vpop.f32.mrf.mxu0
        %v627 = vadd.f32 %v543, %v626
        %v628 = vpop.f32.mrf.mxu0
        %v629 = vpop.f32.mrf.mxu0
        %v630 = vpop.f32.mrf.mxu0
        %631 = vdwg.mxu0
        %v632 = vmax.f32 %v627, 0.0
        %v633 = vpack.c.bf16 %v632, %v632
        %v634 = vld [vmem:[#allocation4 + $0x190] sm:$0xf]
        %v635 = vld [vmem:[#allocation4 + $0x194] sm:$0xf]
        %v636 = vld [vmem:[#allocation4 + $0x198] sm:$0xf]
        %v637 = vld [vmem:[#allocation4 + $0x19c] sm:$0xf]
        %v638 = vld [vmem:[#allocation4 + $0x1a0] sm:$0xf]
        %v639 = vld [vmem:[#allocation4 + $0x1a4] sm:$0xf]
        %v640 = vld [vmem:[#allocation4 + $0x1a8] sm:$0xf]
        %v641 = vld [vmem:[#allocation4 + $0x1ac] sm:$0xf]
        %v642 = vld [vmem:[#allocation4 + $0x1b0] sm:$0xf]
        %v643 = vld [vmem:[#allocation4 + $0x1b4] sm:$0xf]
        %v644 = vld [vmem:[#allocation4 + $0x1b8] sm:$0xf]
        %v645 = vld [vmem:[#allocation4 + $0x1bc] sm:$0xf]
        %v646 = vld [vmem:[#allocation4 + $0x1c0] sm:$0xf]
        %v647 = vld [vmem:[#allocation4 + $0x1c4] sm:$0xf]
        %v648 = vld [vmem:[#allocation4 + $0x1c8] sm:$0xf]
        %v649 = vld [vmem:[#allocation4 + $0x1cc] sm:$0xf]
        %v666 = vunpack.c.l.b16 %v634
        %v667 = vunpack.c.l.b16 %v635
        %v668 = vunpack.c.l.b16 %v636
        %v669 = vunpack.c.l.b16 %v637
        %v670 = vunpack.c.l.b16 %v638
        %v671 = vunpack.c.l.b16 %v639
        %v672 = vunpack.c.l.b16 %v640
        %v673 = vunpack.c.l.b16 %v641
        %v674 = vunpack.c.l.b16 %v642
        %v675 = vunpack.c.l.b16 %v643
        %v676 = vunpack.c.l.b16 %v644
        %v677 = vunpack.c.l.b16 %v645
        %v678 = vunpack.c.l.b16 %v646
        %v679 = vunpack.c.l.b16 %v647
        %v680 = vunpack.c.l.b16 %v648
        %v681 = vunpack.c.l.b16 %v649
        %v682 = vpack.c.b16 %v667, %v666
        %v683 = vpack.c.b16 %v669, %v668
        %v684 = vpack.c.b16 %v671, %v670
        %v685 = vpack.c.b16 %v673, %v672
        %v686 = vpack.c.b16 %v675, %v674
        %v687 = vpack.c.b16 %v677, %v676
        %v688 = vpack.c.b16 %v679, %v678
        %v689 = vpack.c.b16 %v681, %v680
        %698 = vmatprep.subr.bf16.mxu0 0
        %699 = vmatpush1.bf16.msra.mxu0 %v689
        %700 = vmatprep.subr.bf16.mxu0 0
        %701 = vmatpush1.bf16.msra.mxu0 %v688
        %702 = vmatprep.subr.bf16.mxu0 0
        %703 = vmatpush1.bf16.msra.mxu0 %v687
        %704 = vmatprep.subr.bf16.mxu0 0
        %705 = vmatpush1.bf16.msra.mxu0 %v686
        %706 = vmatprep.subr.bf16.mxu0 0
        %707 = vmatpush1.bf16.msra.mxu0 %v685
        %708 = vmatprep.subr.bf16.mxu0 0
        %709 = vmatpush1.bf16.msra.mxu0 %v684
        %710 = vmatprep.subr.bf16.mxu0 0
        %711 = vmatpush1.bf16.msra.mxu0 %v683
        %712 = vmatprep.subr.bf16.mxu0 0
        %713 = vmatpush1.bf16.msra.mxu0 %v682
        %714 = vmatprep.subr.bf16.mxu0 0
        %715 = vmatpush2.bf16.msra.mxu0 0
        %716 = vmatprep.subr.bf16.mxu0 0
        %717 = vmatpush2.bf16.msra.mxu0 0
        %718 = vmatprep.subr.bf16.mxu0 0
        %719 = vmatpush2.bf16.msra.mxu0 0
        %720 = vmatprep.subr.bf16.mxu0 0
        %721 = vmatpush2.bf16.msra.mxu0 0
        %722 = vmatprep.subr.bf16.mxu0 0
        %723 = vmatpush2.bf16.msra.mxu0 0
        %724 = vmatprep.subr.bf16.mxu0 0
        %725 = vmatpush2.bf16.msra.mxu0 0
        %726 = vmatprep.subr.bf16.mxu0 0
        %727 = vmatpush2.bf16.msra.mxu0 0
        %728 = vmatprep.subr.bf16.mxu0 0
        %729 = vmatpush2.bf16.msra.mxu0 0
        %730 = vmatprep.mubr.bf16.mxu0 0
        %731 = vmatmul.mubr.bf16.gmra.mxu0 %v633
        %v732 = vpop.f32.mrf.mxu0
        %v733 = vadd.f32 0.0, %v732
        %v734 = vpop.f32.mrf.mxu0
        %v735 = vpop.f32.mrf.mxu0
        %v736 = vpop.f32.mrf.mxu0
        %737 = vdwg.mxu0
        %v754 = vunpack.c.l.b16 %v507
        %v755 = vunpack.c.l.b16 %v508
        %v756 = vunpack.c.l.b16 %v509
        %v757 = vunpack.c.l.b16 %v510
        %v758 = vunpack.c.l.b16 %v511
        %v759 = vunpack.c.l.b16 %v512
        %v760 = vunpack.c.l.b16 %v513
        %v761 = vunpack.c.l.b16 %v514
        %v762 = vunpack.c.l.b16 %v515
        %v763 = vunpack.c.l.b16 %v516
        %v764 = vunpack.c.l.b16 %v517
        %v765 = vunpack.c.l.b16 %v518
        %v766 = vunpack.c.l.b16 %v519
        %v767 = vunpack.c.l.b16 %v520
        %v768 = vunpack.c.l.b16 %v521
        %v769 = vunpack.c.l.b16 %v522
        %v770 = vpack.c.b16 %v755, %v754
        %v771 = vpack.c.b16 %v757, %v756
        %v772 = vpack.c.b16 %v759, %v758
        %v773 = vpack.c.b16 %v761, %v760
        %v774 = vpack.c.b16 %v763, %v762
        %v775 = vpack.c.b16 %v765, %v764
        %v776 = vpack.c.b16 %v767, %v766
        %v777 = vpack.c.b16 %v769, %v768
        %786 = vmatprep.subr.bf16.mxu0 0
        %787 = vmatpush1.bf16.msra.mxu0 %v777
        %788 = vmatprep.subr.bf16.mxu0 0
        %789 = vmatpush1.bf16.msra.mxu0 %v776
        %790 = vmatprep.subr.bf16.mxu0 0
        %791 = vmatpush1.bf16.msra.mxu0 %v775
        %792 = vmatprep.subr.bf16.mxu0 0
        %793 = vmatpush1.bf16.msra.mxu0 %v774
        %794 = vmatprep.subr.bf16.mxu0 0
        %795 = vmatpush1.bf16.msra.mxu0 %v773
        %796 = vmatprep.subr.bf16.mxu0 0
        %797 = vmatpush1.bf16.msra.mxu0 %v772
        %798 = vmatprep.subr.bf16.mxu0 0
        %799 = vmatpush1.bf16.msra.mxu0 %v771
        %800 = vmatprep.subr.bf16.mxu0 0
        %801 = vmatpush1.bf16.msra.mxu0 %v770
        %802 = vmatprep.subr.bf16.mxu0 0
        %803 = vmatpush2.bf16.msra.mxu0 0
        %804 = vmatprep.subr.bf16.mxu0 0
        %805 = vmatpush2.bf16.msra.mxu0 0
        %806 = vmatprep.subr.bf16.mxu0 0
        %807 = vmatpush2.bf16.msra.mxu0 0
        %808 = vmatprep.subr.bf16.mxu0 0
        %809 = vmatpush2.bf16.msra.mxu0 0
        %810 = vmatprep.subr.bf16.mxu0 0
        %811 = vmatpush2.bf16.msra.mxu0 0
        %812 = vmatprep.subr.bf16.mxu0 0
        %813 = vmatpush2.bf16.msra.mxu0 0
        %814 = vmatprep.subr.bf16.mxu0 0
        %815 = vmatpush2.bf16.msra.mxu0 0
        %816 = vmatprep.subr.bf16.mxu0 0
        %817 = vmatpush2.bf16.msra.mxu0 0
        %818 = vmatprep.mubr.bf16.mxu0 0
        %819 = vmatmul.mubr.bf16.gmra.mxu0 %v506
        %v820 = vpop.f32.mrf.mxu0
        %v821 = vadd.f32 %v733, %v820
        %v822 = vpop.f32.mrf.mxu0
        %v823 = vpop.f32.mrf.mxu0
        %v824 = vpop.f32.mrf.mxu0
        %825 = vdwg.mxu0
        %v826 = vld [vmem:[#allocation4 + $0xd0] sm:$0xf]
        %v827 = vld [vmem:[#allocation4 + $0xd4] sm:$0xf]
        %v828 = vld [vmem:[#allocation4 + $0xd8] sm:$0xf]
        %v829 = vld [vmem:[#allocation4 + $0xdc] sm:$0xf]
        %v830 = vld [vmem:[#allocation4 + $0xe0] sm:$0xf]
        %v831 = vld [vmem:[#allocation4 + $0xe4] sm:$0xf]
        %v832 = vld [vmem:[#allocation4 + $0xe8] sm:$0xf]
        %v833 = vld [vmem:[#allocation4 + $0xec] sm:$0xf]
        %v834 = vld [vmem:[#allocation4 + $0xf0] sm:$0xf]
        %v835 = vld [vmem:[#allocation4 + $0xf4] sm:$0xf]
        %v836 = vld [vmem:[#allocation4 + $0xf8] sm:$0xf]
        %v837 = vld [vmem:[#allocation4 + $0xfc] sm:$0xf]
        %v838 = vld [vmem:[#allocation4 + $0x100] sm:$0xf]
        %v839 = vld [vmem:[#allocation4 + $0x104] sm:$0xf]
        %v840 = vld [vmem:[#allocation4 + $0x108] sm:$0xf]
        %v841 = vld [vmem:[#allocation4 + $0x10c] sm:$0xf]
        %v842 = vld [vmem:[#allocation6 + $0x4] sm:$0x1]
        %v843 = vlaneseq
        %v844 = vshrl.u32 %v843, 7
        %v845 = vsub.s32 0, %v844
        %v846 = vrot.slane %v842, %v845
        %v863 = vunpack.c.l.b16 %v826
        %v864 = vunpack.c.l.b16 %v827
        %v865 = vunpack.c.l.b16 %v828
        %v866 = vunpack.c.l.b16 %v829
        %v867 = vunpack.c.l.b16 %v830
        %v868 = vunpack.c.l.b16 %v831
        %v869 = vunpack.c.l.b16 %v832
        %v870 = vunpack.c.l.b16 %v833
        %v871 = vunpack.c.l.b16 %v834
        %v872 = vunpack.c.l.b16 %v835
        %v873 = vunpack.c.l.b16 %v836
        %v874 = vunpack.c.l.b16 %v837
        %v875 = vunpack.c.l.b16 %v838
        %v876 = vunpack.c.l.b16 %v839
        %v877 = vunpack.c.l.b16 %v840
        %v878 = vunpack.c.l.b16 %v841
        %v879 = vpack.c.b16 %v864, %v863
        %v880 = vpack.c.b16 %v866, %v865
        %v881 = vpack.c.b16 %v868, %v867
        %v882 = vpack.c.b16 %v870, %v869
        %v883 = vpack.c.b16 %v872, %v871
        %v884 = vpack.c.b16 %v874, %v873
        %v885 = vpack.c.b16 %v876, %v875
        %v886 = vpack.c.b16 %v878, %v877
        %895 = vmatprep.subr.bf16.mxu0 0
        %896 = vmatpush1.bf16.msra.mxu0 %v886
        %897 = vmatprep.subr.bf16.mxu0 0
        %898 = vmatpush1.bf16.msra.mxu0 %v885
        %899 = vmatprep.subr.bf16.mxu0 0
        %900 = vmatpush1.bf16.msra.mxu0 %v884
        %901 = vmatprep.subr.bf16.mxu0 0
        %902 = vmatpush1.bf16.msra.mxu0 %v883
        %903 = vmatprep.subr.bf16.mxu0 0
        %904 = vmatpush1.bf16.msra.mxu0 %v882
        %905 = vmatprep.subr.bf16.mxu0 0
        %906 = vmatpush1.bf16.msra.mxu0 %v881
        %907 = vmatprep.subr.bf16.mxu0 0
        %908 = vmatpush1.bf16.msra.mxu0 %v880
        %909 = vmatprep.subr.bf16.mxu0 0
        %910 = vmatpush1.bf16.msra.mxu0 %v879
        %911 = vmatprep.subr.bf16.mxu0 0
        %912 = vmatpush2.bf16.msra.mxu0 0
        %913 = vmatprep.subr.bf16.mxu0 0
        %914 = vmatpush2.bf16.msra.mxu0 0
        %915 = vmatprep.subr.bf16.mxu0 0
        %916 = vmatpush2.bf16.msra.mxu0 0
        %917 = vmatprep.subr.bf16.mxu0 0
        %918 = vmatpush2.bf16.msra.mxu0 0
        %919 = vmatprep.subr.bf16.mxu0 0
        %920 = vmatpush2.bf16.msra.mxu0 0
        %921 = vmatprep.subr.bf16.mxu0 0
        %922 = vmatpush2.bf16.msra.mxu0 0
        %923 = vmatprep.subr.bf16.mxu0 0
        %924 = vmatpush2.bf16.msra.mxu0 0
        %925 = vmatprep.subr.bf16.mxu0 0
        %926 = vmatpush2.bf16.msra.mxu0 0
        %927 = vmatprep.mubr.bf16.mxu0 0
        %928 = vmatmul.mubr.bf16.gmra.mxu0 %v395
        %v929 = vpop.f32.mrf.mxu0
        %v930 = vadd.f32 %v846, %v929
        %v931 = vpop.f32.mrf.mxu0
        %v932 = vpop.f32.mrf.mxu0
        %v933 = vpop.f32.mrf.mxu0
        %934 = vdwg.mxu0
        %v935 = vmax.f32 %v930, 0.0
        %v936 = vpack.c.bf16 %v935, %v935
        %v937 = vld [vmem:[#allocation4 + $0x1d0] sm:$0xf]
        %v938 = vld [vmem:[#allocation4 + $0x1d4] sm:$0xf]
        %v939 = vld [vmem:[#allocation4 + $0x1d8] sm:$0xf]
        %v940 = vld [vmem:[#allocation4 + $0x1dc] sm:$0xf]
        %v941 = vld [vmem:[#allocation4 + $0x1e0] sm:$0xf]
        %v942 = vld [vmem:[#allocation4 + $0x1e4] sm:$0xf]
        %v943 = vld [vmem:[#allocation4 + $0x1e8] sm:$0xf]
        %v944 = vld [vmem:[#allocation4 + $0x1ec] sm:$0xf]
        %v945 = vld [vmem:[#allocation4 + $0x1f0] sm:$0xf]
        %v946 = vld [vmem:[#allocation4 + $0x1f4] sm:$0xf]
        %v947 = vld [vmem:[#allocation4 + $0x1f8] sm:$0xf]
        %v948 = vld [vmem:[#allocation4 + $0x1fc] sm:$0xf]
        %v949 = vld [vmem:[#allocation4 + $0x200] sm:$0xf]
        %v950 = vld [vmem:[#allocation4 + $0x204] sm:$0xf]
        %v951 = vld [vmem:[#allocation4 + $0x208] sm:$0xf]
        %v952 = vld [vmem:[#allocation4 + $0x20c] sm:$0xf]
        %v969 = vunpack.c.l.b16 %v937
        %v970 = vunpack.c.l.b16 %v938
        %v971 = vunpack.c.l.b16 %v939
        %v972 = vunpack.c.l.b16 %v940
        %v973 = vunpack.c.l.b16 %v941
        %v974 = vunpack.c.l.b16 %v942
        %v975 = vunpack.c.l.b16 %v943
        %v976 = vunpack.c.l.b16 %v944
        %v977 = vunpack.c.l.b16 %v945
        %v978 = vunpack.c.l.b16 %v946
        %v979 = vunpack.c.l.b16 %v947
        %v980 = vunpack.c.l.b16 %v948
        %v981 = vunpack.c.l.b16 %v949
        %v982 = vunpack.c.l.b16 %v950
        %v983 = vunpack.c.l.b16 %v951
        %v984 = vunpack.c.l.b16 %v952
        %v985 = vpack.c.b16 %v970, %v969
        %v986 = vpack.c.b16 %v972, %v971
        %v987 = vpack.c.b16 %v974, %v973
        %v988 = vpack.c.b16 %v976, %v975
        %v989 = vpack.c.b16 %v978, %v977
        %v990 = vpack.c.b16 %v980, %v979
        %v991 = vpack.c.b16 %v982, %v981
        %v992 = vpack.c.b16 %v984, %v983
        %1001 = vmatprep.subr.bf16.mxu0 0
        %1002 = vmatpush1.bf16.msra.mxu0 %v992
        %1003 = vmatprep.subr.bf16.mxu0 0
        %1004 = vmatpush1.bf16.msra.mxu0 %v991
        %1005 = vmatprep.subr.bf16.mxu0 0
        %1006 = vmatpush1.bf16.msra.mxu0 %v990
        %1007 = vmatprep.subr.bf16.mxu0 0
        %1008 = vmatpush1.bf16.msra.mxu0 %v989
        %1009 = vmatprep.subr.bf16.mxu0 0
        %1010 = vmatpush1.bf16.msra.mxu0 %v988
        %1011 = vmatprep.subr.bf16.mxu0 0
        %1012 = vmatpush1.bf16.msra.mxu0 %v987
        %1013 = vmatprep.subr.bf16.mxu0 0
        %1014 = vmatpush1.bf16.msra.mxu0 %v986
        %1015 = vmatprep.subr.bf16.mxu0 0
        %1016 = vmatpush1.bf16.msra.mxu0 %v985
        %1017 = vmatprep.subr.bf16.mxu0 0
        %1018 = vmatpush2.bf16.msra.mxu0 0
        %1019 = vmatprep.subr.bf16.mxu0 0
        %1020 = vmatpush2.bf16.msra.mxu0 0
        %1021 = vmatprep.subr.bf16.mxu0 0
        %1022 = vmatpush2.bf16.msra.mxu0 0
        %1023 = vmatprep.subr.bf16.mxu0 0
        %1024 = vmatpush2.bf16.msra.mxu0 0
        %1025 = vmatprep.subr.bf16.mxu0 0
        %1026 = vmatpush2.bf16.msra.mxu0 0
        %1027 = vmatprep.subr.bf16.mxu0 0
        %1028 = vmatpush2.bf16.msra.mxu0 0
        %1029 = vmatprep.subr.bf16.mxu0 0
        %1030 = vmatpush2.bf16.msra.mxu0 0
        %1031 = vmatprep.subr.bf16.mxu0 0
        %1032 = vmatpush2.bf16.msra.mxu0 0
        %1033 = vmatprep.mubr.bf16.mxu0 0
        %1034 = vmatmul.mubr.bf16.gmra.mxu0 %v936
        %v1035 = vpop.f32.mrf.mxu0
        %v1036 = vadd.f32 0.0, %v1035
        %v1037 = vpop.f32.mrf.mxu0
        %v1038 = vpop.f32.mrf.mxu0
        %v1039 = vpop.f32.mrf.mxu0
        %1040 = vdwg.mxu0
        %v1041 = vadd.f32 %v821, %v1036
        %v1042 = vld [vmem:[#allocation4 + $0x110] sm:$0xf]
        %v1043 = vld [vmem:[#allocation4 + $0x114] sm:$0xf]
        %v1044 = vld [vmem:[#allocation4 + $0x118] sm:$0xf]
        %v1045 = vld [vmem:[#allocation4 + $0x11c] sm:$0xf]
        %v1046 = vld [vmem:[#allocation4 + $0x120] sm:$0xf]
        %v1047 = vld [vmem:[#allocation4 + $0x124] sm:$0xf]
        %v1048 = vld [vmem:[#allocation4 + $0x128] sm:$0xf]
        %v1049 = vld [vmem:[#allocation4 + $0x12c] sm:$0xf]
        %v1050 = vld [vmem:[#allocation4 + $0x130] sm:$0xf]
        %v1051 = vld [vmem:[#allocation4 + $0x134] sm:$0xf]
        %v1052 = vld [vmem:[#allocation4 + $0x138] sm:$0xf]
        %v1053 = vld [vmem:[#allocation4 + $0x13c] sm:$0xf]
        %v1054 = vld [vmem:[#allocation4 + $0x140] sm:$0xf]
        %v1055 = vld [vmem:[#allocation4 + $0x144] sm:$0xf]
        %v1056 = vld [vmem:[#allocation4 + $0x148] sm:$0xf]
        %v1057 = vld [vmem:[#allocation4 + $0x14c] sm:$0xf]
        %v1058 = vld [vmem:[#allocation6 + $0x5] sm:$0x1]
        %v1059 = vlaneseq
        %v1060 = vshrl.u32 %v1059, 7
        %v1061 = vsub.s32 0, %v1060
        %v1062 = vrot.slane %v1058, %v1061
        %v1079 = vunpack.c.l.b16 %v1042
        %v1080 = vunpack.c.l.b16 %v1043
        %v1081 = vunpack.c.l.b16 %v1044
        %v1082 = vunpack.c.l.b16 %v1045
        %v1083 = vunpack.c.l.b16 %v1046
        %v1084 = vunpack.c.l.b16 %v1047
        %v1085 = vunpack.c.l.b16 %v1048
        %v1086 = vunpack.c.l.b16 %v1049
        %v1087 = vunpack.c.l.b16 %v1050
        %v1088 = vunpack.c.l.b16 %v1051
        %v1089 = vunpack.c.l.b16 %v1052
        %v1090 = vunpack.c.l.b16 %v1053
        %v1091 = vunpack.c.l.b16 %v1054
        %v1092 = vunpack.c.l.b16 %v1055
        %v1093 = vunpack.c.l.b16 %v1056
        %v1094 = vunpack.c.l.b16 %v1057
        %v1095 = vpack.c.b16 %v1080, %v1079
        %v1096 = vpack.c.b16 %v1082, %v1081
        %v1097 = vpack.c.b16 %v1084, %v1083
        %v1098 = vpack.c.b16 %v1086, %v1085
        %v1099 = vpack.c.b16 %v1088, %v1087
        %v1100 = vpack.c.b16 %v1090, %v1089
        %v1101 = vpack.c.b16 %v1092, %v1091
        %v1102 = vpack.c.b16 %v1094, %v1093
        %1111 = vmatprep.subr.bf16.mxu0 0
        %1112 = vmatpush1.bf16.msra.mxu0 %v1102
        %1113 = vmatprep.subr.bf16.mxu0 0
        %1114 = vmatpush1.bf16.msra.mxu0 %v1101
        %1115 = vmatprep.subr.bf16.mxu0 0
        %1116 = vmatpush1.bf16.msra.mxu0 %v1100
        %1117 = vmatprep.subr.bf16.mxu0 0
        %1118 = vmatpush1.bf16.msra.mxu0 %v1099
        %1119 = vmatprep.subr.bf16.mxu0 0
        %1120 = vmatpush1.bf16.msra.mxu0 %v1098
        %1121 = vmatprep.subr.bf16.mxu0 0
        %1122 = vmatpush1.bf16.msra.mxu0 %v1097
        %1123 = vmatprep.subr.bf16.mxu0 0
        %1124 = vmatpush1.bf16.msra.mxu0 %v1096
        %1125 = vmatprep.subr.bf16.mxu0 0
        %1126 = vmatpush1.bf16.msra.mxu0 %v1095
        %1127 = vmatprep.subr.bf16.mxu0 0
        %1128 = vmatpush2.bf16.msra.mxu0 0
        %1129 = vmatprep.subr.bf16.mxu0 0
        %1130 = vmatpush2.bf16.msra.mxu0 0
        %1131 = vmatprep.subr.bf16.mxu0 0
        %1132 = vmatpush2.bf16.msra.mxu0 0
        %1133 = vmatprep.subr.bf16.mxu0 0
        %1134 = vmatpush2.bf16.msra.mxu0 0
        %1135 = vmatprep.subr.bf16.mxu0 0
        %1136 = vmatpush2.bf16.msra.mxu0 0
        %1137 = vmatprep.subr.bf16.mxu0 0
        %1138 = vmatpush2.bf16.msra.mxu0 0
        %1139 = vmatprep.subr.bf16.mxu0 0
        %1140 = vmatpush2.bf16.msra.mxu0 0
        %1141 = vmatprep.subr.bf16.mxu0 0
        %1142 = vmatpush2.bf16.msra.mxu0 0
        %1143 = vmatprep.mubr.bf16.mxu0 0
        %1144 = vmatmul.mubr.bf16.gmra.mxu0 %v395
        %v1145 = vpop.f32.mrf.mxu0
        %v1146 = vadd.f32 %v1062, %v1145
        %v1147 = vpop.f32.mrf.mxu0
        %v1148 = vpop.f32.mrf.mxu0
        %v1149 = vpop.f32.mrf.mxu0
        %1150 = vdwg.mxu0
        %v1151 = vmax.f32 %v1146, 0.0
        %v1152 = vpack.c.bf16 %v1151, %v1151
        %v1153 = vld [vmem:[#allocation4 + $0x210] sm:$0xf]
        %v1154 = vld [vmem:[#allocation4 + $0x214] sm:$0xf]
        %v1155 = vld [vmem:[#allocation4 + $0x218] sm:$0xf]
        %v1156 = vld [vmem:[#allocation4 + $0x21c] sm:$0xf]
        %v1157 = vld [vmem:[#allocation4 + $0x220] sm:$0xf]
        %v1158 = vld [vmem:[#allocation4 + $0x224] sm:$0xf]
        %v1159 = vld [vmem:[#allocation4 + $0x228] sm:$0xf]
        %v1160 = vld [vmem:[#allocation4 + $0x22c] sm:$0xf]
        %v1161 = vld [vmem:[#allocation4 + $0x230] sm:$0xf]
        %v1162 = vld [vmem:[#allocation4 + $0x234] sm:$0xf]
        %v1163 = vld [vmem:[#allocation4 + $0x238] sm:$0xf]
        %v1164 = vld [vmem:[#allocation4 + $0x23c] sm:$0xf]
        %v1165 = vld [vmem:[#allocation4 + $0x240] sm:$0xf]
        %v1166 = vld [vmem:[#allocation4 + $0x244] sm:$0xf]
        %v1167 = vld [vmem:[#allocation4 + $0x248] sm:$0xf]
        %v1168 = vld [vmem:[#allocation4 + $0x24c] sm:$0xf]
        %v1185 = vunpack.c.l.b16 %v1153
        %v1186 = vunpack.c.l.b16 %v1154
        %v1187 = vunpack.c.l.b16 %v1155
        %v1188 = vunpack.c.l.b16 %v1156
        %v1189 = vunpack.c.l.b16 %v1157
        %v1190 = vunpack.c.l.b16 %v1158
        %v1191 = vunpack.c.l.b16 %v1159
        %v1192 = vunpack.c.l.b16 %v1160
        %v1193 = vunpack.c.l.b16 %v1161
        %v1194 = vunpack.c.l.b16 %v1162
        %v1195 = vunpack.c.l.b16 %v1163
        %v1196 = vunpack.c.l.b16 %v1164
        %v1197 = vunpack.c.l.b16 %v1165
        %v1198 = vunpack.c.l.b16 %v1166
        %v1199 = vunpack.c.l.b16 %v1167
        %v1200 = vunpack.c.l.b16 %v1168
        %v1201 = vpack.c.b16 %v1186, %v1185
        %v1202 = vpack.c.b16 %v1188, %v1187
        %v1203 = vpack.c.b16 %v1190, %v1189
        %v1204 = vpack.c.b16 %v1192, %v1191
        %v1205 = vpack.c.b16 %v1194, %v1193
        %v1206 = vpack.c.b16 %v1196, %v1195
        %v1207 = vpack.c.b16 %v1198, %v1197
        %v1208 = vpack.c.b16 %v1200, %v1199
        %1217 = vmatprep.subr.bf16.mxu0 0
        %1218 = vmatpush1.bf16.msra.mxu0 %v1208
        %1219 = vmatprep.subr.bf16.mxu0 0
        %1220 = vmatpush1.bf16.msra.mxu0 %v1207
        %1221 = vmatprep.subr.bf16.mxu0 0
        %1222 = vmatpush1.bf16.msra.mxu0 %v1206
        %1223 = vmatprep.subr.bf16.mxu0 0
        %1224 = vmatpush1.bf16.msra.mxu0 %v1205
        %1225 = vmatprep.subr.bf16.mxu0 0
        %1226 = vmatpush1.bf16.msra.mxu0 %v1204
        %1227 = vmatprep.subr.bf16.mxu0 0
        %1228 = vmatpush1.bf16.msra.mxu0 %v1203
        %1229 = vmatprep.subr.bf16.mxu0 0
        %1230 = vmatpush1.bf16.msra.mxu0 %v1202
        %1231 = vmatprep.subr.bf16.mxu0 0
        %1232 = vmatpush1.bf16.msra.mxu0 %v1201
        %1233 = vmatprep.subr.bf16.mxu0 0
        %1234 = vmatpush2.bf16.msra.mxu0 0
        %1235 = vmatprep.subr.bf16.mxu0 0
        %1236 = vmatpush2.bf16.msra.mxu0 0
        %1237 = vmatprep.subr.bf16.mxu0 0
        %1238 = vmatpush2.bf16.msra.mxu0 0
        %1239 = vmatprep.subr.bf16.mxu0 0
        %1240 = vmatpush2.bf16.msra.mxu0 0
        %1241 = vmatprep.subr.bf16.mxu0 0
        %1242 = vmatpush2.bf16.msra.mxu0 0
        %1243 = vmatprep.subr.bf16.mxu0 0
        %1244 = vmatpush2.bf16.msra.mxu0 0
        %1245 = vmatprep.subr.bf16.mxu0 0
        %1246 = vmatpush2.bf16.msra.mxu0 0
        %1247 = vmatprep.subr.bf16.mxu0 0
        %1248 = vmatpush2.bf16.msra.mxu0 0
        %1249 = vmatprep.mubr.bf16.mxu0 0
        %1250 = vmatmul.mubr.bf16.gmra.mxu0 %v1152
        %v1251 = vpop.f32.mrf.mxu0
        %v1252 = vadd.f32 0.0, %v1251
        %v1253 = vpop.f32.mrf.mxu0
        %v1254 = vpop.f32.mrf.mxu0
        %v1255 = vpop.f32.mrf.mxu0
        %1256 = vdwg.mxu0
        %v1257 = vadd.f32 %v1041, %v1252
        %v1258 = vld [vmem:[#allocation6 + $0x6] sm:$0x1]
        %v1259 = vlaneseq
        %v1260 = vshrl.u32 %v1259, 7
        %v1261 = vsub.s32 0, %v1260
        %v1262 = vrot.slane %v1258, %v1261
        %v1263 = vadd.f32 %v1257, %v1262
        %v1264 = vmax.f32 %v1263, 0.0
        %v1265 = vpack.c.bf16 %v1264, %v1264
        %v1266 = vld [vmem:[#allocation4 + $0x250] sm:$0xf]
        %v1267 = vld [vmem:[#allocation4 + $0x254] sm:$0xf]
        %v1268 = vld [vmem:[#allocation4 + $0x258] sm:$0xf]
        %v1269 = vld [vmem:[#allocation4 + $0x25c] sm:$0xf]
        %v1270 = vld [vmem:[#allocation4 + $0x260] sm:$0xf]
        %v1271 = vld [vmem:[#allocation4 + $0x264] sm:$0xf]
        %v1272 = vld [vmem:[#allocation4 + $0x268] sm:$0xf]
        %v1273 = vld [vmem:[#allocation4 + $0x26c] sm:$0xf]
        %v1274 = vld [vmem:[#allocation4 + $0x270] sm:$0xf]
        %v1275 = vld [vmem:[#allocation4 + $0x274] sm:$0xf]
        %v1276 = vld [vmem:[#allocation4 + $0x278] sm:$0xf]
        %v1277 = vld [vmem:[#allocation4 + $0x27c] sm:$0xf]
        %v1278 = vld [vmem:[#allocation4 + $0x280] sm:$0xf]
        %v1279 = vld [vmem:[#allocation4 + $0x284] sm:$0xf]
        %v1280 = vld [vmem:[#allocation4 + $0x288] sm:$0xf]
        %v1281 = vld [vmem:[#allocation4 + $0x28c] sm:$0xf]
        %v1282 = vld [vmem:[#allocation6 + $0x7] sm:$0x1]
        %v1283 = vlaneseq
        %v1284 = vshrl.u32 %v1283, 7
        %v1285 = vsub.s32 0, %v1284
        %v1286 = vrot.slane %v1282, %v1285
        %v1303 = vunpack.c.l.b16 %v1266
        %v1304 = vunpack.c.l.b16 %v1267
        %v1305 = vunpack.c.l.b16 %v1268
        %v1306 = vunpack.c.l.b16 %v1269
        %v1307 = vunpack.c.l.b16 %v1270
        %v1308 = vunpack.c.l.b16 %v1271
        %v1309 = vunpack.c.l.b16 %v1272
        %v1310 = vunpack.c.l.b16 %v1273
        %v1311 = vunpack.c.l.b16 %v1274
        %v1312 = vunpack.c.l.b16 %v1275
        %v1313 = vunpack.c.l.b16 %v1276
        %v1314 = vunpack.c.l.b16 %v1277
        %v1315 = vunpack.c.l.b16 %v1278
        %v1316 = vunpack.c.l.b16 %v1279
        %v1317 = vunpack.c.l.b16 %v1280
        %v1318 = vunpack.c.l.b16 %v1281
        %v1319 = vpack.c.b16 %v1304, %v1303
        %v1320 = vpack.c.b16 %v1306, %v1305
        %v1321 = vpack.c.b16 %v1308, %v1307
        %v1322 = vpack.c.b16 %v1310, %v1309
        %v1323 = vpack.c.b16 %v1312, %v1311
        %v1324 = vpack.c.b16 %v1314, %v1313
        %v1325 = vpack.c.b16 %v1316, %v1315
        %v1326 = vpack.c.b16 %v1318, %v1317
        %1335 = vmatprep.subr.bf16.mxu0 0
        %1336 = vmatpush1.bf16.msra.mxu0 %v1326
        %1337 = vmatprep.subr.bf16.mxu0 0
        %1338 = vmatpush1.bf16.msra.mxu0 %v1325
        %1339 = vmatprep.subr.bf16.mxu0 0
        %1340 = vmatpush1.bf16.msra.mxu0 %v1324
        %1341 = vmatprep.subr.bf16.mxu0 0
        %1342 = vmatpush1.bf16.msra.mxu0 %v1323
        %1343 = vmatprep.subr.bf16.mxu0 0
        %1344 = vmatpush1.bf16.msra.mxu0 %v1322
        %1345 = vmatprep.subr.bf16.mxu0 0
        %1346 = vmatpush1.bf16.msra.mxu0 %v1321
        %1347 = vmatprep.subr.bf16.mxu0 0
        %1348 = vmatpush1.bf16.msra.mxu0 %v1320
        %1349 = vmatprep.subr.bf16.mxu0 0
        %1350 = vmatpush1.bf16.msra.mxu0 %v1319
        %1351 = vmatprep.subr.bf16.mxu0 0
        %1352 = vmatpush2.bf16.msra.mxu0 0
        %1353 = vmatprep.subr.bf16.mxu0 0
        %1354 = vmatpush2.bf16.msra.mxu0 0
        %1355 = vmatprep.subr.bf16.mxu0 0
        %1356 = vmatpush2.bf16.msra.mxu0 0
        %1357 = vmatprep.subr.bf16.mxu0 0
        %1358 = vmatpush2.bf16.msra.mxu0 0
        %1359 = vmatprep.subr.bf16.mxu0 0
        %1360 = vmatpush2.bf16.msra.mxu0 0
        %1361 = vmatprep.subr.bf16.mxu0 0
        %1362 = vmatpush2.bf16.msra.mxu0 0
        %1363 = vmatprep.subr.bf16.mxu0 0
        %1364 = vmatpush2.bf16.msra.mxu0 0
        %1365 = vmatprep.subr.bf16.mxu0 0
        %1366 = vmatpush2.bf16.msra.mxu0 0
        %1367 = vmatprep.mubr.bf16.mxu0 0
        %1368 = vmatmul.mubr.bf16.gmra.mxu0 %v1265
        %v1369 = vpop.f32.mrf.mxu0
        %v1370 = vadd.f32 %v1286, %v1369
        %v1371 = vpop.f32.mrf.mxu0
        %v1372 = vpop.f32.mrf.mxu0
        %v1373 = vpop.f32.mrf.mxu0
        %1374 = vdwg.mxu0
        %v1375 = vmax.f32 %v1370, 0.0
        %v1376 = vld [vmem:[#allocation6 + $0x8] sm:$0x1]
        %v1377 = vlaneseq
        %v1378 = vshrl.u32 %v1377, 7
        %v1379 = vsub.s32 0, %v1378
        %v1380 = vrot.slane %v1376, %v1379
        %v1381 = vmul.f32 %v1375, %v1380
        %1382 = vadd.xlane.f32.xlu0 %v1381
        %v1383 = vpop.xlane.xlu0 %1382
        %v1384 = vld [vmem:[#allocation6 + $0x9] sm:$0x1]
        %v1385 = vlaneseq
        %v1386 = vshrl.u32 %v1385, 7
        %v1387 = vsub.s32 0, %v1386
        %v1388 = vrot.slane %v1384, %v1387
        %v1389 = vadd.f32 %v1383, %v1388
        %v1390 = vxor.u32 %v1389, 2147483648
        %v1391 = vmul.f32 %v1390, 1.442695
        %v1392 = vpow.pop %v1391
        %v1393 = vadd.f32 %v1392, 1.0
        %v1394 = vrcp.pop %v1393
        %v1395 = vmul.f32 1.0, %v1394
        %vm1396 = vcmask 7168
        %1397 = vst.msk [vmem:[%s214] sm:$0xff] %vm1396, %v1395
        %p1398 = scmp.lt.s32.totalorder %s18, 1
        %s1399 = scalar_select %p1398, %s18, 1
        %s1400 = smul.addr %s1399, 8
        %s1401 = scalar_lea.vmem %s3, %s1400
        // Predicated region
        $region45: #{tpu_custom_call.1} parent=31 // pred_check
          %p1402 = pneg %p104
        $region46: #{tpu_custom_call.1} parent=31 // pred_check_branch
          %1404 = sbr.rel (%p1402) target = $region48
        $region47: #{tpu_custom_call.1} parent=31 // pred_region
          _
        $region48: #{tpu_custom_call.1} parent=31 // pred_fallthru
          _
      $region32: #{tpu_custom_call.1} parent=5 // pred_fallthru
        _
      %p1405 = scmp.le.s32.totalorder 2, %s13
      // Predicated region
      $region49: #{tpu_custom_call.1} parent=5 // pred_check
        %p1406 = pneg %p1405
      $region50: #{tpu_custom_call.1} parent=5 // pred_check_branch
        %1408 = sbr.rel (%p1406) target = $region52
      $region51: #{tpu_custom_call.1} parent=5 // pred_region
        %s1409 = ssub.s32 %s13, 2
        // Predicated region
        $region53: #{tpu_custom_call.1} parent=51 // pred_check
          %p1410 = pneg %p110
        $region54: #{tpu_custom_call.1} parent=51 // pred_check_branch
          %1412 = sbr.rel (%p1410) target = $region56
        $region55: #{tpu_custom_call.1} parent=51 // pred_region
          %p1413 = scmp.lt.s32.totalorder %s19, 1
          %s1414 = scalar_select %p1413, %s19, 1
          %s1415 = smul.addr %s1414, 8
          %s1416 = scalar_lea.vmem %s3, %s1415
        $region56: #{tpu_custom_call.1} parent=51 // pred_fallthru
          _
      $region52: #{tpu_custom_call.1} parent=5 // pred_fallthru
        _
    $region6: #{tpu_custom_call.1} parent=1 // loop_footer
      %s17 = sadd.s32 1, %s13
    $region7: #{tpu_custom_call.1} parent=1 // loop_footer_branch
      %12 = sbr.rel target = $region3
    $region8: #{tpu_custom_call.1} parent=1 // loop_exit
      _
    %1417 = vsyncpa [#allocation3], 1
    %s1418 = scalar_lea.sflag [#allocation3], 1
    %1419 = vsyncpa %s1418, 1
    %1420 = vsyncpa [#allocation5], 1

</llo_original>
